<compile_context>
chip_gen: v6e
topology: v6e:2x2x1
jax: 0.10.0
libtpu: 0.0.40
codegen_flags: <defaults>
</compile_context>

<pallas_src>
import functools
import math

import jax
import jax.numpy as jnp
from jax import lax
from jax.experimental import pallas as pl
from jax.experimental.pallas import tpu as pltpu


def _layer_norm(x, w, b, eps=1e-5):
    mu = jnp.mean(x, axis=-1, keepdims=True)
    xc = x - mu
    var = jnp.mean(xc * xc, axis=-1, keepdims=True)
    return xc * lax.rsqrt(var + eps) * w + b


def _gelu_exact(x):
    # nn.GELU default (erf-based, not tanh approximation)
    return 0.5 * x * (1.0 + lax.erf(x * (1.0 / math.sqrt(2.0))))


def residual_attention_block_kernel(
    x_ref,
    ln1_w_ref, ln1_b_ref,
    wq_ref, bq_ref,              # [D, D]  bf16, [1, D]  f32
    wk_ref, bk_ref,              # [D, D]  bf16, [1, D]  f32
    wv_ref, bv_ref,              # [D, D]  bf16, [1, D]  f32
    wo_ref, bo_ref,              # [D, D]  bf16, [1, D]  f32
    ln2_w_ref, ln2_b_ref,
    wfc_ref, bfc_ref,            # [D, mlp] bf16, [1, mlp] f32
    wproj_ref, bproj_ref,        # [mlp, D] bf16, [1, D]  f32
    o_ref,
    attn_acc_ref,                # VMEM scratch [S, D] f32
    *, n_head,
):
    x = x_ref[0].astype(jnp.float32)           # [S, D]
    S, D = x.shape
    hd = D // n_head
    scale = 1.0 / math.sqrt(hd)

    # ----- attention branch: LN1 -> MHA -> residual (ls_1 = Identity) -----
    xn = _layer_norm(x, ln1_w_ref[...], ln1_b_ref[...])
    xn_bf = xn.astype(jnp.bfloat16)
    q = (jnp.dot(xn_bf, wq_ref[...], preferred_element_type=jnp.float32)
         + bq_ref[...])                        # [S, D] f32
    k = (jnp.dot(xn_bf, wk_ref[...], preferred_element_type=jnp.float32)
         + bk_ref[...])
    v = (jnp.dot(xn_bf, wv_ref[...], preferred_element_type=jnp.float32)
         + bv_ref[...])
    # Fold the softmax scale into Q once (S*D mul) instead of per-head S*S.
    q = q * scale

    for h in range(n_head):                    # static Python loop, traced once
        sl = slice(h * hd, (h + 1) * hd)
        qh = q[:, sl].astype(jnp.bfloat16)
        kh = k[:, sl].astype(jnp.bfloat16)
        vh = v[:, sl].astype(jnp.bfloat16)
        # scores = qh @ kh^T : contract last dims of both operands on the MXU,
        # no explicit transposed copy of K.
        s = lax.dot_general(
            qh, kh, (((1,), (1,)), ((), ())),
            preferred_element_type=jnp.float32,
        )                                      # [S, S] f32
        s = s - jnp.max(s, axis=-1, keepdims=True)
        p = jnp.exp(s)
        p = p * pl.reciprocal(jnp.sum(p, axis=-1, keepdims=True), approx=True)
        attn_acc_ref[:, sl] = jnp.dot(
            p.astype(jnp.bfloat16), vh, preferred_element_type=jnp.float32)

    attn = (
        jnp.dot(attn_acc_ref[...].astype(jnp.bfloat16), wo_ref[...],
                preferred_element_type=jnp.float32)
        + bo_ref[...]
    )
    x1 = x + attn                               # ls_1 = Identity

    # ----- MLP branch: LN2 -> Linear -> GELU -> Linear -> residual -----
    xn2 = _layer_norm(x1, ln2_w_ref[...], ln2_b_ref[...])
    h1 = (
        jnp.dot(xn2.astype(jnp.bfloat16), wfc_ref[...],
                preferred_element_type=jnp.float32)
        + bfc_ref[...]
    )
    h1 = _gelu_exact(h1)
    h2 = (
        jnp.dot(h1.astype(jnp.bfloat16), wproj_ref[...],
                preferred_element_type=jnp.float32)
        + bproj_ref[...]
    )
    o_ref[0] = (x1 + h2).astype(o_ref.dtype)    # ls_2 = Identity


def residual_attention_block(x, params, n_head):
    """x: [B, S, D] float32. params: dict of torch-layout f32 weights."""
    B, S, D = x.shape
    mlp_width = params["fc_w"].shape[0]

    # Parameter prep (once, outside the kernel): transpose to [in, out], cast
    # to bf16, and split the fused in_proj into q/k/v so the kernel never
    # lane-slices a [S, 3D] activation. Biases / LN params stay f32.
    w_in = params["in_proj_w"]                             # [3D, D] torch layout
    wq = w_in[:D].T.astype(jnp.bfloat16)                   # [D, D]
    wk = w_in[D:2 * D].T.astype(jnp.bfloat16)
    wv = w_in[2 * D:].T.astype(jnp.bfloat16)
    b_in = params["in_proj_b"]                             # [1, 3D]
    bq, bk, bv = b_in[:, :D], b_in[:, D:2 * D], b_in[:, 2 * D:]
    wo = params["out_proj_w"].T.astype(jnp.bfloat16)       # [D, D]
    wfc = params["fc_w"].T.astype(jnp.bfloat16)            # [D, mlp]
    wproj = params["proj_w"].T.astype(jnp.bfloat16)        # [mlp, D]

    def full_spec(shape):
        nd = len(shape)
        return pl.BlockSpec(shape, lambda b, _nd=nd: (0,) * _nd)

    kernel = functools.partial(residual_attention_block_kernel, n_head=n_head)

    return pl.pallas_call(
        kernel,
        out_shape=jax.ShapeDtypeStruct((B, S, D), x.dtype),
        grid_spec=pltpu.PrefetchScalarGridSpec(
            num_scalar_prefetch=0,
            grid=(B,),
            in_specs=[
                pl.BlockSpec((1, S, D), lambda b: (b, 0, 0)),          # x
                full_spec((1, D)), full_spec((1, D)),                  # ln_1 w, b
                full_spec((D, D)), full_spec((1, D)),                  # q proj
                full_spec((D, D)), full_spec((1, D)),                  # k proj
                full_spec((D, D)), full_spec((1, D)),                  # v proj
                full_spec((D, D)), full_spec((1, D)),                  # out_proj
                full_spec((1, D)), full_spec((1, D)),                  # ln_2 w, b
                full_spec((D, mlp_width)), full_spec((1, mlp_width)),  # c_fc
                full_spec((mlp_width, D)), full_spec((1, D)),          # c_proj
            ],
            out_specs=pl.BlockSpec((1, S, D), lambda b: (b, 0, 0)),
            scratch_shapes=[pltpu.VMEM((S, D), jnp.float32)],
        ),
        compiler_params=pltpu.CompilerParams(
            dimension_semantics=("parallel",),
            vmem_limit_bytes=64 * 1024 * 1024,
        ),
    )(
        x,
        params["ln1_w"], params["ln1_b"],
        wq, bq, wk, bk, wv, bv,
        wo, params["out_proj_b"],
        params["ln2_w"], params["ln2_b"],
        wfc, params["fc_b"],
        wproj, params["proj_b"],
    )


def _reference(x, p, n_head):
    """Pure-JAX f32 reference mirroring the torch module, for verification."""
    def ln(x, w, b, eps=1e-5):
        mu = jnp.mean(x, -1, keepdims=True)
        var = jnp.mean((x - mu) ** 2, -1, keepdims=True)
        return (x - mu) / jnp.sqrt(var + eps) * w[0] + b[0]

    B, S, D = x.shape
    hd = D // n_head
    xn = ln(x, p["ln1_w"], p["ln1_b"])
    qkv = xn @ p["in_proj_w"].T + p["in_proj_b"][0]
    q, k, v = jnp.split(qkv, 3, axis=-1)
    q = q.reshape(B, S, n_head, hd).transpose(0, 2, 1, 3)
    k = k.reshape(B, S, n_head, hd).transpose(0, 2, 1, 3)
    v = v.reshape(B, S, n_head, hd).transpose(0, 2, 1, 3)
    s = jnp.einsum("bhqd,bhkd->bhqk", q, k) / math.sqrt(hd)
    a = jax.nn.softmax(s, axis=-1)
    o = jnp.einsum("bhqk,bhkd->bhqd", a, v).transpose(0, 2, 1, 3).reshape(B, S, D)
    o = o @ p["out_proj_w"].T + p["out_proj_b"][0]
    x1 = x + o
    xn2 = ln(x1, p["ln2_w"], p["ln2_b"])
    h1 = xn2 @ p["fc_w"].T + p["fc_b"][0]
    h1 = 0.5 * h1 * (1.0 + lax.erf(h1 / jnp.sqrt(2.0)))
    h2 = h1 @ p["proj_w"].T + p["proj_b"][0]
    return x1 + h2


if __name__ == "__main__":
    B, S, D = 2, 8, 32
    n_head = 4
    mlp_width = int(D * 4.0)

    key = jax.random.PRNGKey(0)
    ks = jax.random.split(key, 8)

    params = {
        "ln1_w": jnp.ones((1, D), jnp.float32),
        "ln1_b": jnp.zeros((1, D), jnp.float32),
        "in_proj_w": 0.05 * jax.random.normal(ks[0], (3 * D, D), jnp.float32),
        "in_proj_b": 0.01 * jax.random.normal(ks[1], (1, 3 * D), jnp.float32),
        "out_proj_w": 0.05 * jax.random.normal(ks[2], (D, D), jnp.float32),
        "out_proj_b": 0.01 * jax.random.normal(ks[3], (1, D), jnp.float32),
        "ln2_w": jnp.ones((1, D), jnp.float32),
        "ln2_b": jnp.zeros((1, D), jnp.float32),
        "fc_w": 0.05 * jax.random.normal(ks[4], (mlp_width, D), jnp.float32),
        "fc_b": 0.01 * jax.random.normal(ks[5], (1, mlp_width), jnp.float32),
        "proj_w": 0.05 * jax.random.normal(ks[6], (D, mlp_width), jnp.float32),
        "proj_b": 0.01 * jax.random.normal(ks[7], (1, D), jnp.float32),
    }

    x = jax.random.normal(jax.random.PRNGKey(42), (B, S, D), jnp.float32)

    out = residual_attention_block(x, params, n_head)
    out = jax.block_until_ready(out)

    ref = _reference(x, params, n_head)
    assert out.shape == (B, S, D)
    # bf16 MXU operands + approx reciprocal => tolerance loosened vs pure-f32.
    assert jnp.allclose(out, ref, atol=2e-2, rtol=2e-2), (
        float(jnp.max(jnp.abs(out - ref)))
    )
    print("KERNEL_OK")
</pallas_src>

<mosaic_0001>
module attributes {stable_mosaic.version = 11 : i64} {
  func.func @residual_attention_block_kernel(%arg0: i32, %arg1: memref<1x8x32xf32, #tpu.memory_space<vmem>>, %arg2: memref<1x32xf32, #tpu.memory_space<vmem>>, %arg3: memref<1x32xf32, #tpu.memory_space<vmem>>, %arg4: memref<32x32xbf16, #tpu.memory_space<vmem>>, %arg5: memref<1x32xf32, #tpu.memory_space<vmem>>, %arg6: memref<32x32xbf16, #tpu.memory_space<vmem>>, %arg7: memref<1x32xf32, #tpu.memory_space<vmem>>, %arg8: memref<32x32xbf16, #tpu.memory_space<vmem>>, %arg9: memref<1x32xf32, #tpu.memory_space<vmem>>, %arg10: memref<32x32xbf16, #tpu.memory_space<vmem>>, %arg11: memref<1x32xf32, #tpu.memory_space<vmem>>, %arg12: memref<1x32xf32, #tpu.memory_space<vmem>>, %arg13: memref<1x32xf32, #tpu.memory_space<vmem>>, %arg14: memref<32x128xbf16, #tpu.memory_space<vmem>>, %arg15: memref<1x128xf32, #tpu.memory_space<vmem>>, %arg16: memref<128x32xbf16, #tpu.memory_space<vmem>>, %arg17: memref<1x32xf32, #tpu.memory_space<vmem>>, %arg18: memref<1x8x32xf32, #tpu.memory_space<vmem>>, %arg19: memref<8x32xf32, #tpu.memory_space<vmem>>) attributes {dimension_semantics = [#tpu.dimension_semantics<parallel>], iteration_bounds = array<i64: 2>, scalar_prefetch = 0 : i64, scratch_operands = 1 : i64, tpu.core_type = #tpu.core_type<tc>, window_params = [{transform_indices = @transform_0, window_bounds = array<i64: 1, 8, 32>}, {pipeline_mode = #tpu.pipeline_mode<synchronous>, transform_indices = @transform_1, window_bounds = array<i64: 1, 32>}, {pipeline_mode = #tpu.pipeline_mode<synchronous>, transform_indices = @transform_2, window_bounds = array<i64: 1, 32>}, {pipeline_mode = #tpu.pipeline_mode<synchronous>, transform_indices = @transform_3, window_bounds = array<i64: 32, 32>}, {pipeline_mode = #tpu.pipeline_mode<synchronous>, transform_indices = @transform_4, window_bounds = array<i64: 1, 32>}, {pipeline_mode = #tpu.pipeline_mode<synchronous>, transform_indices = @transform_5, window_bounds = array<i64: 32, 32>}, {pipeline_mode = #tpu.pipeline_mode<synchronous>, transform_indices = @transform_6, window_bounds = array<i64: 1, 32>}, {pipeline_mode = #tpu.pipeline_mode<synchronous>, transform_indices = @transform_7, window_bounds = array<i64: 32, 32>}, {pipeline_mode = #tpu.pipeline_mode<synchronous>, transform_indices = @transform_8, window_bounds = array<i64: 1, 32>}, {pipeline_mode = #tpu.pipeline_mode<synchronous>, transform_indices = @transform_9, window_bounds = array<i64: 32, 32>}, {pipeline_mode = #tpu.pipeline_mode<synchronous>, transform_indices = @transform_10, window_bounds = array<i64: 1, 32>}, {pipeline_mode = #tpu.pipeline_mode<synchronous>, transform_indices = @transform_11, window_bounds = array<i64: 1, 32>}, {pipeline_mode = #tpu.pipeline_mode<synchronous>, transform_indices = @transform_12, window_bounds = array<i64: 1, 32>}, {pipeline_mode = #tpu.pipeline_mode<synchronous>, transform_indices = @transform_13, window_bounds = array<i64: 32, 128>}, {pipeline_mode = #tpu.pipeline_mode<synchronous>, transform_indices = @transform_14, window_bounds = array<i64: 1, 128>}, {pipeline_mode = #tpu.pipeline_mode<synchronous>, transform_indices = @transform_15, window_bounds = array<i64: 128, 32>}, {pipeline_mode = #tpu.pipeline_mode<synchronous>, transform_indices = @transform_16, window_bounds = array<i64: 1, 32>}, {transform_indices = @transform_17, window_bounds = array<i64: 1, 8, 32>}]} {
    %c0 = arith.constant 0 : index
    %c0_0 = arith.constant 0 : index
    %c0_1 = arith.constant 0 : index
    %0 = vector.load %arg1[%c0, %c0_0, %c0_1] : memref<1x8x32xf32, #tpu.memory_space<vmem>>, vector<1x8x32xf32>
    %1 = vector.shape_cast %0 : vector<1x8x32xf32> to vector<8x32xf32>
    %c0_2 = arith.constant 0 : index
    %c0_3 = arith.constant 0 : index
    %2 = vector.load %arg2[%c0_2, %c0_3] : memref<1x32xf32, #tpu.memory_space<vmem>>, vector<1x32xf32>
    %c0_4 = arith.constant 0 : index
    %c0_5 = arith.constant 0 : index
    %3 = vector.load %arg3[%c0_4, %c0_5] : memref<1x32xf32, #tpu.memory_space<vmem>>, vector<1x32xf32>
    %cst = arith.constant dense<0.000000e+00> : vector<8xf32>
    %4 = vector.multi_reduction <add>, %1, %cst [1] : vector<8x32xf32> to vector<8xf32>
    %5 = vector.shape_cast %4 : vector<8xf32> to vector<8x1xf32>
    %cst_6 = arith.constant 3.200000e+01 : f32
    %6 = vector.broadcast %cst_6 : f32 to vector<8x1xf32>
    %7 = arith.divf %5, %6 : vector<8x1xf32>
    %8 = vector.broadcast %7 : vector<8x1xf32> to vector<8x32xf32>
    %9 = arith.subf %1, %8 : vector<8x32xf32>
    %10 = arith.mulf %9, %9 : vector<8x32xf32>
    %cst_7 = arith.constant dense<0.000000e+00> : vector<8xf32>
    %11 = vector.multi_reduction <add>, %10, %cst_7 [1] : vector<8x32xf32> to vector<8xf32>
    %12 = vector.shape_cast %11 : vector<8xf32> to vector<8x1xf32>
    %cst_8 = arith.constant 3.200000e+01 : f32
    %13 = vector.broadcast %cst_8 : f32 to vector<8x1xf32>
    %14 = arith.divf %12, %13 : vector<8x1xf32>
    %cst_9 = arith.constant 9.99999974E-6 : f32
    %15 = vector.broadcast %cst_9 : f32 to vector<8x1xf32>
    %16 = arith.addf %14, %15 : vector<8x1xf32>
    %17 = math.rsqrt %16 : vector<8x1xf32>
    %18 = vector.broadcast %17 : vector<8x1xf32> to vector<8x32xf32>
    %19 = arith.mulf %9, %18 : vector<8x32xf32>
    %20 = vector.broadcast %2 : vector<1x32xf32> to vector<8x32xf32>
    %21 = arith.mulf %19, %20 : vector<8x32xf32>
    %22 = vector.broadcast %3 : vector<1x32xf32> to vector<8x32xf32>
    %23 = arith.addf %21, %22 : vector<8x32xf32>
    %24 = arith.truncf %23 : vector<8x32xf32> to vector<8x32xbf16>
    %c0_10 = arith.constant 0 : index
    %c0_11 = arith.constant 0 : index
    %25 = vector.load %arg4[%c0_10, %c0_11] : memref<32x32xbf16, #tpu.memory_space<vmem>>, vector<32x32xbf16>
    %cst_12 = arith.constant dense<0.000000e+00> : vector<8x32xf32>
    %26 = tpu.matmul %24, %25, %cst_12 {dimension_numbers = #tpu.dot_dimension_numbers<[1], [0], [0], [1], [0, 0, 1, 1], [], []>} : vector<8x32xbf16>, vector<32x32xbf16>, vector<8x32xf32> -> vector<8x32xf32>
    %c0_13 = arith.constant 0 : index
    %c0_14 = arith.constant 0 : index
    %27 = vector.load %arg5[%c0_13, %c0_14] : memref<1x32xf32, #tpu.memory_space<vmem>>, vector<1x32xf32>
    %28 = vector.broadcast %27 : vector<1x32xf32> to vector<8x32xf32>
    %29 = arith.addf %26, %28 : vector<8x32xf32>
    %c0_15 = arith.constant 0 : index
    %c0_16 = arith.constant 0 : index
    %30 = vector.load %arg6[%c0_15, %c0_16] : memref<32x32xbf16, #tpu.memory_space<vmem>>, vector<32x32xbf16>
    %cst_17 = arith.constant dense<0.000000e+00> : vector<8x32xf32>
    %31 = tpu.matmul %24, %30, %cst_17 {dimension_numbers = #tpu.dot_dimension_numbers<[1], [0], [0], [1], [0, 0, 1, 1], [], []>} : vector<8x32xbf16>, vector<32x32xbf16>, vector<8x32xf32> -> vector<8x32xf32>
    %c0_18 = arith.constant 0 : index
    %c0_19 = arith.constant 0 : index
    %32 = vector.load %arg7[%c0_18, %c0_19] : memref<1x32xf32, #tpu.memory_space<vmem>>, vector<1x32xf32>
    %33 = vector.broadcast %32 : vector<1x32xf32> to vector<8x32xf32>
    %34 = arith.addf %31, %33 : vector<8x32xf32>
    %c0_20 = arith.constant 0 : index
    %c0_21 = arith.constant 0 : index
    %35 = vector.load %arg8[%c0_20, %c0_21] : memref<32x32xbf16, #tpu.memory_space<vmem>>, vector<32x32xbf16>
    %cst_22 = arith.constant dense<0.000000e+00> : vector<8x32xf32>
    %36 = tpu.matmul %24, %35, %cst_22 {dimension_numbers = #tpu.dot_dimension_numbers<[1], [0], [0], [1], [0, 0, 1, 1], [], []>} : vector<8x32xbf16>, vector<32x32xbf16>, vector<8x32xf32> -> vector<8x32xf32>
    %c0_23 = arith.constant 0 : index
    %c0_24 = arith.constant 0 : index
    %37 = vector.load %arg9[%c0_23, %c0_24] : memref<1x32xf32, #tpu.memory_space<vmem>>, vector<1x32xf32>
    %38 = vector.broadcast %37 : vector<1x32xf32> to vector<8x32xf32>
    %39 = arith.addf %36, %38 : vector<8x32xf32>
    %cst_25 = arith.constant 0.353553385 : f32
    %40 = vector.broadcast %cst_25 : f32 to vector<8x32xf32>
    %41 = arith.mulf %29, %40 : vector<8x32xf32>
    %42 = vector.extract_strided_slice %41 {offsets = [0, 0], sizes = [8, 8], strides = [1, 1]} : vector<8x32xf32> to vector<8x8xf32>
    %43 = arith.truncf %42 : vector<8x8xf32> to vector<8x8xbf16>
    %44 = vector.extract_strided_slice %34 {offsets = [0, 0], sizes = [8, 8], strides = [1, 1]} : vector<8x32xf32> to vector<8x8xf32>
    %45 = arith.truncf %44 : vector<8x8xf32> to vector<8x8xbf16>
    %46 = vector.extract_strided_slice %39 {offsets = [0, 0], sizes = [8, 8], strides = [1, 1]} : vector<8x32xf32> to vector<8x8xf32>
    %47 = arith.truncf %46 : vector<8x8xf32> to vector<8x8xbf16>
    %cst_26 = arith.constant dense<0.000000e+00> : vector<8x8xf32>
    %48 = tpu.matmul %43, %45, %cst_26 {dimension_numbers = #tpu.dot_dimension_numbers<[1], [1], [0], [0], [0, 0, 1, 0], [], []>} : vector<8x8xbf16>, vector<8x8xbf16>, vector<8x8xf32> -> vector<8x8xf32>
    %cst_27 = arith.constant dense<0xFF800000> : vector<8xf32>
    %49 = vector.multi_reduction <maximumf>, %48, %cst_27 [1] : vector<8x8xf32> to vector<8xf32>
    %50 = vector.shape_cast %49 : vector<8xf32> to vector<8x1xf32>
    %51 = vector.broadcast %50 : vector<8x1xf32> to vector<8x8xf32>
    %52 = arith.subf %48, %51 : vector<8x8xf32>
    %53 = math.exp %52 : vector<8x8xf32>
    %cst_28 = arith.constant dense<0.000000e+00> : vector<8xf32>
    %54 = vector.multi_reduction <add>, %53, %cst_28 [1] : vector<8x8xf32> to vector<8xf32>
    %55 = vector.shape_cast %54 : vector<8xf32> to vector<8x1xf32>
    %56 = tpu.reciprocal %55 {approx = true} : vector<8x1xf32> -> vector<8x1xf32>
    %57 = vector.broadcast %56 : vector<8x1xf32> to vector<8x8xf32>
    %58 = arith.mulf %53, %57 : vector<8x8xf32>
    %59 = arith.truncf %58 : vector<8x8xf32> to vector<8x8xbf16>
    %cst_29 = arith.constant dense<0.000000e+00> : vector<8x8xf32>
    %60 = tpu.matmul %59, %47, %cst_29 {dimension_numbers = #tpu.dot_dimension_numbers<[1], [0], [0], [1], [0, 0, 1, 1], [], []>} : vector<8x8xbf16>, vector<8x8xbf16>, vector<8x8xf32> -> vector<8x8xf32>
    %c0_30 = arith.constant 0 : index
    %c0_31 = arith.constant 0 : index
    %61 = vector.load %arg19[%c0_30, %c0_31] : memref<8x32xf32, #tpu.memory_space<vmem>>, vector<8x8xf32>
    tpu.vector_store %arg19[%c0_30, %c0_31], %60 {strides = array<i32>} : memref<8x32xf32, #tpu.memory_space<vmem>>, vector<8x8xf32>,
    %62 = vector.extract_strided_slice %41 {offsets = [0, 8], sizes = [8, 8], strides = [1, 1]} : vector<8x32xf32> to vector<8x8xf32>
    %63 = arith.truncf %62 : vector<8x8xf32> to vector<8x8xbf16>
    %64 = vector.extract_strided_slice %34 {offsets = [0, 8], sizes = [8, 8], strides = [1, 1]} : vector<8x32xf32> to vector<8x8xf32>
    %65 = arith.truncf %64 : vector<8x8xf32> to vector<8x8xbf16>
    %66 = vector.extract_strided_slice %39 {offsets = [0, 8], sizes = [8, 8], strides = [1, 1]} : vector<8x32xf32> to vector<8x8xf32>
    %67 = arith.truncf %66 : vector<8x8xf32> to vector<8x8xbf16>
    %cst_32 = arith.constant dense<0.000000e+00> : vector<8x8xf32>
    %68 = tpu.matmul %63, %65, %cst_32 {dimension_numbers = #tpu.dot_dimension_numbers<[1], [1], [0], [0], [0, 0, 1, 0], [], []>} : vector<8x8xbf16>, vector<8x8xbf16>, vector<8x8xf32> -> vector<8x8xf32>
    %cst_33 = arith.constant dense<0xFF800000> : vector<8xf32>
    %69 = vector.multi_reduction <maximumf>, %68, %cst_33 [1] : vector<8x8xf32> to vector<8xf32>
    %70 = vector.shape_cast %69 : vector<8xf32> to vector<8x1xf32>
    %71 = vector.broadcast %70 : vector<8x1xf32> to vector<8x8xf32>
    %72 = arith.subf %68, %71 : vector<8x8xf32>
    %73 = math.exp %72 : vector<8x8xf32>
    %cst_34 = arith.constant dense<0.000000e+00> : vector<8xf32>
    %74 = vector.multi_reduction <add>, %73, %cst_34 [1] : vector<8x8xf32> to vector<8xf32>
    %75 = vector.shape_cast %74 : vector<8xf32> to vector<8x1xf32>
    %76 = tpu.reciprocal %75 {approx = true} : vector<8x1xf32> -> vector<8x1xf32>
    %77 = vector.broadcast %76 : vector<8x1xf32> to vector<8x8xf32>
    %78 = arith.mulf %73, %77 : vector<8x8xf32>
    %79 = arith.truncf %78 : vector<8x8xf32> to vector<8x8xbf16>
    %cst_35 = arith.constant dense<0.000000e+00> : vector<8x8xf32>
    %80 = tpu.matmul %79, %67, %cst_35 {dimension_numbers = #tpu.dot_dimension_numbers<[1], [0], [0], [1], [0, 0, 1, 1], [], []>} : vector<8x8xbf16>, vector<8x8xbf16>, vector<8x8xf32> -> vector<8x8xf32>
    %c0_36 = arith.constant 0 : index
    %c8 = arith.constant 8 : index
    %81 = vector.load %arg19[%c0_36, %c8] : memref<8x32xf32, #tpu.memory_space<vmem>>, vector<8x8xf32>
    tpu.vector_store %arg19[%c0_36, %c8], %80 {strides = array<i32>} : memref<8x32xf32, #tpu.memory_space<vmem>>, vector<8x8xf32>,
    %82 = vector.extract_strided_slice %41 {offsets = [0, 16], sizes = [8, 8], strides = [1, 1]} : vector<8x32xf32> to vector<8x8xf32>
    %83 = arith.truncf %82 : vector<8x8xf32> to vector<8x8xbf16>
    %84 = vector.extract_strided_slice %34 {offsets = [0, 16], sizes = [8, 8], strides = [1, 1]} : vector<8x32xf32> to vector<8x8xf32>
    %85 = arith.truncf %84 : vector<8x8xf32> to vector<8x8xbf16>
    %86 = vector.extract_strided_slice %39 {offsets = [0, 16], sizes = [8, 8], strides = [1, 1]} : vector<8x32xf32> to vector<8x8xf32>
    %87 = arith.truncf %86 : vector<8x8xf32> to vector<8x8xbf16>
    %cst_37 = arith.constant dense<0.000000e+00> : vector<8x8xf32>
    %88 = tpu.matmul %83, %85, %cst_37 {dimension_numbers = #tpu.dot_dimension_numbers<[1], [1], [0], [0], [0, 0, 1, 0], [], []>} : vector<8x8xbf16>, vector<8x8xbf16>, vector<8x8xf32> -> vector<8x8xf32>
    %cst_38 = arith.constant dense<0xFF800000> : vector<8xf32>
    %89 = vector.multi_reduction <maximumf>, %88, %cst_38 [1] : vector<8x8xf32> to vector<8xf32>
    %90 = vector.shape_cast %89 : vector<8xf32> to vector<8x1xf32>
    %91 = vector.broadcast %90 : vector<8x1xf32> to vector<8x8xf32>
    %92 = arith.subf %88, %91 : vector<8x8xf32>
    %93 = math.exp %92 : vector<8x8xf32>
    %cst_39 = arith.constant dense<0.000000e+00> : vector<8xf32>
    %94 = vector.multi_reduction <add>, %93, %cst_39 [1] : vector<8x8xf32> to vector<8xf32>
    %95 = vector.shape_cast %94 : vector<8xf32> to vector<8x1xf32>
    %96 = tpu.reciprocal %95 {approx = true} : vector<8x1xf32> -> vector<8x1xf32>
    %97 = vector.broadcast %96 : vector<8x1xf32> to vector<8x8xf32>
    %98 = arith.mulf %93, %97 : vector<8x8xf32>
    %99 = arith.truncf %98 : vector<8x8xf32> to vector<8x8xbf16>
    %cst_40 = arith.constant dense<0.000000e+00> : vector<8x8xf32>
    %100 = tpu.matmul %99, %87, %cst_40 {dimension_numbers = #tpu.dot_dimension_numbers<[1], [0], [0], [1], [0, 0, 1, 1], [], []>} : vector<8x8xbf16>, vector<8x8xbf16>, vector<8x8xf32> -> vector<8x8xf32>
    %c0_41 = arith.constant 0 : index
    %c16 = arith.constant 16 : index
    %101 = vector.load %arg19[%c0_41, %c16] : memref<8x32xf32, #tpu.memory_space<vmem>>, vector<8x8xf32>
    tpu.vector_store %arg19[%c0_41, %c16], %100 {strides = array<i32>} : memref<8x32xf32, #tpu.memory_space<vmem>>, vector<8x8xf32>,
    %102 = vector.extract_strided_slice %41 {offsets = [0, 24], sizes = [8, 8], strides = [1, 1]} : vector<8x32xf32> to vector<8x8xf32>
    %103 = arith.truncf %102 : vector<8x8xf32> to vector<8x8xbf16>
    %104 = vector.extract_strided_slice %34 {offsets = [0, 24], sizes = [8, 8], strides = [1, 1]} : vector<8x32xf32> to vector<8x8xf32>
    %105 = arith.truncf %104 : vector<8x8xf32> to vector<8x8xbf16>
    %106 = vector.extract_strided_slice %39 {offsets = [0, 24], sizes = [8, 8], strides = [1, 1]} : vector<8x32xf32> to vector<8x8xf32>
    %107 = arith.truncf %106 : vector<8x8xf32> to vector<8x8xbf16>
    %cst_42 = arith.constant dense<0.000000e+00> : vector<8x8xf32>
    %108 = tpu.matmul %103, %105, %cst_42 {dimension_numbers = #tpu.dot_dimension_numbers<[1], [1], [0], [0], [0, 0, 1, 0], [], []>} : vector<8x8xbf16>, vector<8x8xbf16>, vector<8x8xf32> -> vector<8x8xf32>
    %cst_43 = arith.constant dense<0xFF800000> : vector<8xf32>
    %109 = vector.multi_reduction <maximumf>, %108, %cst_43 [1] : vector<8x8xf32> to vector<8xf32>
    %110 = vector.shape_cast %109 : vector<8xf32> to vector<8x1xf32>
    %111 = vector.broadcast %110 : vector<8x1xf32> to vector<8x8xf32>
    %112 = arith.subf %108, %111 : vector<8x8xf32>
    %113 = math.exp %112 : vector<8x8xf32>
    %cst_44 = arith.constant dense<0.000000e+00> : vector<8xf32>
    %114 = vector.multi_reduction <add>, %113, %cst_44 [1] : vector<8x8xf32> to vector<8xf32>
    %115 = vector.shape_cast %114 : vector<8xf32> to vector<8x1xf32>
    %116 = tpu.reciprocal %115 {approx = true} : vector<8x1xf32> -> vector<8x1xf32>
    %117 = vector.broadcast %116 : vector<8x1xf32> to vector<8x8xf32>
    %118 = arith.mulf %113, %117 : vector<8x8xf32>
    %119 = arith.truncf %118 : vector<8x8xf32> to vector<8x8xbf16>
    %cst_45 = arith.constant dense<0.000000e+00> : vector<8x8xf32>
    %120 = tpu.matmul %119, %107, %cst_45 {dimension_numbers = #tpu.dot_dimension_numbers<[1], [0], [0], [1], [0, 0, 1, 1], [], []>} : vector<8x8xbf16>, vector<8x8xbf16>, vector<8x8xf32> -> vector<8x8xf32>
    %c0_46 = arith.constant 0 : index
    %c24 = arith.constant 24 : index
    %121 = vector.load %arg19[%c0_46, %c24] : memref<8x32xf32, #tpu.memory_space<vmem>>, vector<8x8xf32>
    tpu.vector_store %arg19[%c0_46, %c24], %120 {strides = array<i32>} : memref<8x32xf32, #tpu.memory_space<vmem>>, vector<8x8xf32>,
    %c0_47 = arith.constant 0 : index
    %c0_48 = arith.constant 0 : index
    %122 = vector.load %arg19[%c0_47, %c0_48] : memref<8x32xf32, #tpu.memory_space<vmem>>, vector<8x32xf32>
    %123 = arith.truncf %122 : vector<8x32xf32> to vector<8x32xbf16>
    %c0_49 = arith.constant 0 : index
    %c0_50 = arith.constant 0 : index
    %124 = vector.load %arg10[%c0_49, %c0_50] : memref<32x32xbf16, #tpu.memory_space<vmem>>, vector<32x32xbf16>
    %cst_51 = arith.constant dense<0.000000e+00> : vector<8x32xf32>
    %125 = tpu.matmul %123, %124, %cst_51 {dimension_numbers = #tpu.dot_dimension_numbers<[1], [0], [0], [1], [0, 0, 1, 1], [], []>} : vector<8x32xbf16>, vector<32x32xbf16>, vector<8x32xf32> -> vector<8x32xf32>
    %c0_52 = arith.constant 0 : index
    %c0_53 = arith.constant 0 : index
    %126 = vector.load %arg11[%c0_52, %c0_53] : memref<1x32xf32, #tpu.memory_space<vmem>>, vector<1x32xf32>
    %127 = vector.broadcast %126 : vector<1x32xf32> to vector<8x32xf32>
    %128 = arith.addf %125, %127 : vector<8x32xf32>
    %129 = arith.addf %1, %128 : vector<8x32xf32>
    %c0_54 = arith.constant 0 : index
    %c0_55 = arith.constant 0 : index
    %130 = vector.load %arg12[%c0_54, %c0_55] : memref<1x32xf32, #tpu.memory_space<vmem>>, vector<1x32xf32>
    %c0_56 = arith.constant 0 : index
    %c0_57 = arith.constant 0 : index
    %131 = vector.load %arg13[%c0_56, %c0_57] : memref<1x32xf32, #tpu.memory_space<vmem>>, vector<1x32xf32>
    %cst_58 = arith.constant dense<0.000000e+00> : vector<8xf32>
    %132 = vector.multi_reduction <add>, %129, %cst_58 [1] : vector<8x32xf32> to vector<8xf32>
    %133 = vector.shape_cast %132 : vector<8xf32> to vector<8x1xf32>
    %cst_59 = arith.constant 3.200000e+01 : f32
    %134 = vector.broadcast %cst_59 : f32 to vector<8x1xf32>
    %135 = arith.divf %133, %134 : vector<8x1xf32>
    %136 = vector.broadcast %135 : vector<8x1xf32> to vector<8x32xf32>
    %137 = arith.subf %129, %136 : vector<8x32xf32>
    %138 = arith.mulf %137, %137 : vector<8x32xf32>
    %cst_60 = arith.constant dense<0.000000e+00> : vector<8xf32>
    %139 = vector.multi_reduction <add>, %138, %cst_60 [1] : vector<8x32xf32> to vector<8xf32>
    %140 = vector.shape_cast %139 : vector<8xf32> to vector<8x1xf32>
    %cst_61 = arith.constant 3.200000e+01 : f32
    %141 = vector.broadcast %cst_61 : f32 to vector<8x1xf32>
    %142 = arith.divf %140, %141 : vector<8x1xf32>
    %cst_62 = arith.constant 9.99999974E-6 : f32
    %143 = vector.broadcast %cst_62 : f32 to vector<8x1xf32>
    %144 = arith.addf %142, %143 : vector<8x1xf32>
    %145 = math.rsqrt %144 : vector<8x1xf32>
    %146 = vector.broadcast %145 : vector<8x1xf32> to vector<8x32xf32>
    %147 = arith.mulf %137, %146 : vector<8x32xf32>
    %148 = vector.broadcast %130 : vector<1x32xf32> to vector<8x32xf32>
    %149 = arith.mulf %147, %148 : vector<8x32xf32>
    %150 = vector.broadcast %131 : vector<1x32xf32> to vector<8x32xf32>
    %151 = arith.addf %149, %150 : vector<8x32xf32>
    %152 = arith.truncf %151 : vector<8x32xf32> to vector<8x32xbf16>
    %c0_63 = arith.constant 0 : index
    %c0_64 = arith.constant 0 : index
    %153 = vector.load %arg14[%c0_63, %c0_64] : memref<32x128xbf16, #tpu.memory_space<vmem>>, vector<32x128xbf16>
    %cst_65 = arith.constant dense<0.000000e+00> : vector<8x128xf32>
    %154 = tpu.matmul %152, %153, %cst_65 {dimension_numbers = #tpu.dot_dimension_numbers<[1], [0], [0], [1], [0, 0, 1, 1], [], []>} : vector<8x32xbf16>, vector<32x128xbf16>, vector<8x128xf32> -> vector<8x128xf32>
    %c0_66 = arith.constant 0 : index
    %c0_67 = arith.constant 0 : index
    %155 = vector.load %arg15[%c0_66, %c0_67] : memref<1x128xf32, #tpu.memory_space<vmem>>, vector<1x128xf32>
    %156 = vector.broadcast %155 : vector<1x128xf32> to vector<8x128xf32>
    %157 = arith.addf %154, %156 : vector<8x128xf32>
    %cst_68 = arith.constant 5.000000e-01 : f32
    %158 = vector.broadcast %cst_68 : f32 to vector<8x128xf32>
    %159 = arith.mulf %158, %157 : vector<8x128xf32>
    %cst_69 = arith.constant 0.707106769 : f32
    %160 = vector.broadcast %cst_69 : f32 to vector<8x128xf32>
    %161 = arith.mulf %157, %160 : vector<8x128xf32>
    %162 = math.erf %161 : vector<8x128xf32>
    %cst_70 = arith.constant 1.000000e+00 : f32
    %163 = vector.broadcast %cst_70 : f32 to vector<8x128xf32>
    %164 = arith.addf %163, %162 : vector<8x128xf32>
    %165 = arith.mulf %159, %164 : vector<8x128xf32>
    %166 = arith.truncf %165 : vector<8x128xf32> to vector<8x128xbf16>
    %c0_71 = arith.constant 0 : index
    %c0_72 = arith.constant 0 : index
    %167 = vector.load %arg16[%c0_71, %c0_72] : memref<128x32xbf16, #tpu.memory_space<vmem>>, vector<128x32xbf16>
    %cst_73 = arith.constant dense<0.000000e+00> : vector<8x32xf32>
    %168 = tpu.matmul %166, %167, %cst_73 {dimension_numbers = #tpu.dot_dimension_numbers<[1], [0], [0], [1], [0, 0, 1, 1], [], []>} : vector<8x128xbf16>, vector<128x32xbf16>, vector<8x32xf32> -> vector<8x32xf32>
    %c0_74 = arith.constant 0 : index
    %c0_75 = arith.constant 0 : index
    %169 = vector.load %arg17[%c0_74, %c0_75] : memref<1x32xf32, #tpu.memory_space<vmem>>, vector<1x32xf32>
    %170 = vector.broadcast %169 : vector<1x32xf32> to vector<8x32xf32>
    %171 = arith.addf %168, %170 : vector<8x32xf32>
    %172 = arith.addf %129, %171 : vector<8x32xf32>
    %c0_76 = arith.constant 0 : index
    %c0_77 = arith.constant 0 : index
    %c0_78 = arith.constant 0 : index
    %173 = vector.load %arg18[%c0_76, %c0_77, %c0_78] : memref<1x8x32xf32, #tpu.memory_space<vmem>>, vector<1x8x32xf32>
    %174 = vector.shape_cast %173 : vector<1x8x32xf32> to vector<8x32xf32>
    %175 = vector.shape_cast %172 : vector<8x32xf32> to vector<1x8x32xf32>
    tpu.vector_store %arg18[%c0_76, %c0_77, %c0_78], %175 {strides = array<i32>} : memref<1x8x32xf32, #tpu.memory_space<vmem>>, vector<1x8x32xf32>,
    return
  }
  func.func @transform_0(%arg0: i32) -> (i32, i32, i32) {
    %c0_i32 = arith.constant 0 : i32
    %c0_i32_0 = arith.constant 0 : i32
    %c0_i32_1 = arith.constant 0 : i32
    return %arg0, %c0_i32, %c0_i32_0 : i32, i32, i32
  }
  func.func @transform_1(%arg0: i32) -> (i32, i32) {
    %c0_i32 = arith.constant 0 : i32
    %c0_i32_0 = arith.constant 0 : i32
    %c0_i32_1 = arith.constant 0 : i32
    return %c0_i32, %c0_i32_0 : i32, i32
  }
  func.func @transform_2(%arg0: i32) -> (i32, i32) {
    %c0_i32 = arith.constant 0 : i32
    %c0_i32_0 = arith.constant 0 : i32
    %c0_i32_1 = arith.constant 0 : i32
    return %c0_i32, %c0_i32_0 : i32, i32
  }
  func.func @transform_3(%arg0: i32) -> (i32, i32) {
    %c0_i32 = arith.constant 0 : i32
    %c0_i32_0 = arith.constant 0 : i32
    %c0_i32_1 = arith.constant 0 : i32
    return %c0_i32, %c0_i32_0 : i32, i32
  }
  func.func @transform_4(%arg0: i32) -> (i32, i32) {
    %c0_i32 = arith.constant 0 : i32
    %c0_i32_0 = arith.constant 0 : i32
    %c0_i32_1 = arith.constant 0 : i32
    return %c0_i32, %c0_i32_0 : i32, i32
  }
  func.func @transform_5(%arg0: i32) -> (i32, i32) {
    %c0_i32 = arith.constant 0 : i32
    %c0_i32_0 = arith.constant 0 : i32
    %c0_i32_1 = arith.constant 0 : i32
    return %c0_i32, %c0_i32_0 : i32, i32
  }
  func.func @transform_6(%arg0: i32) -> (i32, i32) {
    %c0_i32 = arith.constant 0 : i32
    %c0_i32_0 = arith.constant 0 : i32
    %c0_i32_1 = arith.constant 0 : i32
    return %c0_i32, %c0_i32_0 : i32, i32
  }
  func.func @transform_7(%arg0: i32) -> (i32, i32) {
    %c0_i32 = arith.constant 0 : i32
    %c0_i32_0 = arith.constant 0 : i32
    %c0_i32_1 = arith.constant 0 : i32
    return %c0_i32, %c0_i32_0 : i32, i32
  }
  func.func @transform_8(%arg0: i32) -> (i32, i32) {
    %c0_i32 = arith.constant 0 : i32
    %c0_i32_0 = arith.constant 0 : i32
    %c0_i32_1 = arith.constant 0 : i32
    return %c0_i32, %c0_i32_0 : i32, i32
  }
  func.func @transform_9(%arg0: i32) -> (i32, i32) {
    %c0_i32 = arith.constant 0 : i32
    %c0_i32_0 = arith.constant 0 : i32
    %c0_i32_1 = arith.constant 0 : i32
    return %c0_i32, %c0_i32_0 : i32, i32
  }
  func.func @transform_10(%arg0: i32) -> (i32, i32) {
    %c0_i32 = arith.constant 0 : i32
    %c0_i32_0 = arith.constant 0 : i32
    %c0_i32_1 = arith.constant 0 : i32
    return %c0_i32, %c0_i32_0 : i32, i32
  }
  func.func @transform_11(%arg0: i32) -> (i32, i32) {
    %c0_i32 = arith.constant 0 : i32
    %c0_i32_0 = arith.constant 0 : i32
    %c0_i32_1 = arith.constant 0 : i32
    return %c0_i32, %c0_i32_0 : i32, i32
  }
  func.func @transform_12(%arg0: i32) -> (i32, i32) {
    %c0_i32 = arith.constant 0 : i32
    %c0_i32_0 = arith.constant 0 : i32
    %c0_i32_1 = arith.constant 0 : i32
    return %c0_i32, %c0_i32_0 : i32, i32
  }
  func.func @transform_13(%arg0: i32) -> (i32, i32) {
    %c0_i32 = arith.constant 0 : i32
    %c0_i32_0 = arith.constant 0 : i32
    %c0_i32_1 = arith.constant 0 : i32
    return %c0_i32, %c0_i32_0 : i32, i32
  }
  func.func @transform_14(%arg0: i32) -> (i32, i32) {
    %c0_i32 = arith.constant 0 : i32
    %c0_i32_0 = arith.constant 0 : i32
    %c0_i32_1 = arith.constant 0 : i32
    return %c0_i32, %c0_i32_0 : i32, i32
  }
  func.func @transform_15(%arg0: i32) -> (i32, i32) {
    %c0_i32 = arith.constant 0 : i32
    %c0_i32_0 = arith.constant 0 : i32
    %c0_i32_1 = arith.constant 0 : i32
    return %c0_i32, %c0_i32_0 : i32, i32
  }
  func.func @transform_16(%arg0: i32) -> (i32, i32) {
    %c0_i32 = arith.constant 0 : i32
    %c0_i32_0 = arith.constant 0 : i32
    %c0_i32_1 = arith.constant 0 : i32
    return %c0_i32, %c0_i32_0 : i32, i32
  }
  func.func @transform_17(%arg0: i32) -> (i32, i32, i32) {
    %c0_i32 = arith.constant 0 : i32
    %c0_i32_0 = arith.constant 0 : i32
    %c0_i32_1 = arith.constant 0 : i32
    return %arg0, %c0_i32, %c0_i32_0 : i32, i32, i32
  }
}

</mosaic_0001>

<llo_original>
// kernel: tpu_custom_call.1
$region0: #{tpu_custom_call.1}
  #allocation0 [shape = 'u32[]', space=smem, size = 0x4, offset = 0x4, fixed_abs, tag = 'smem constant byte address 0x4 - core index']
  #allocation1 [shape = 'u32[144,128]{1,0:T(1,128)}', space=vmem, size = 0x12000, scoped, tag = 'internal scratch']
  #allocation2 [shape = 'f32[8,32]{1,0:T(8,128)}', space=vmem, size = 0x1000, scoped, tag = 'scratch operand']
  %s0 = inlined_call_operand.vmem [shape: f32[2,8,32], index: 0, kind: input, shape index: {}]
  %s1 = inlined_call_operand.vmem [shape: f32[1,32], index: 1, kind: input, shape index: {}]
  %s2 = inlined_call_operand.vmem [shape: f32[1,32], index: 2, kind: input, shape index: {}]
  %s3 = inlined_call_operand.vmem [shape: bf16[32,32], index: 3, kind: input, shape index: {}]
  %s4 = inlined_call_operand.vmem [shape: f32[1,32], index: 4, kind: input, shape index: {}]
  %s5 = inlined_call_operand.vmem [shape: bf16[32,32], index: 5, kind: input, shape index: {}]
  %s6 = inlined_call_operand.vmem [shape: f32[1,32], index: 6, kind: input, shape index: {}]
  %s7 = inlined_call_operand.vmem [shape: bf16[32,32], index: 7, kind: input, shape index: {}]
  %s8 = inlined_call_operand.vmem [shape: f32[1,32], index: 8, kind: input, shape index: {}]
  %s9 = inlined_call_operand.vmem [shape: bf16[32,32], index: 9, kind: input, shape index: {}]
  %s10 = inlined_call_operand.vmem [shape: f32[1,32], index: 10, kind: input, shape index: {}]
  %s11 = inlined_call_operand.vmem [shape: f32[1,32], index: 11, kind: input, shape index: {}]
  %s12 = inlined_call_operand.vmem [shape: f32[1,32], index: 12, kind: input, shape index: {}]
  %s13 = inlined_call_operand.hbm [shape: bf16[32,128], index: 13, kind: input, shape index: {}]
  %s14 = inlined_call_operand.vmem [shape: f32[1,128], index: 14, kind: input, shape index: {}]
  %s15 = inlined_call_operand.vmem [shape: bf16[128,32], index: 15, kind: input, shape index: {}]
  %s16 = inlined_call_operand.vmem [shape: f32[1,32], index: 16, kind: input, shape index: {}]
  %s17 = inlined_call_operand.hbm [shape: f32[2,8,32], index: 17, kind: output, shape index: {}]
  %s18 = sld [smem:[#allocation0]]
  $region105: #{tpu_custom_call.1} parent=0
    _
  %s20 = ssub.s32 1, %s18
  %s21 = scalar_select 0, %s20, %s18
  $region1: #{tpu_custom_call.1} parent=0
    #allocation3 [shape = 'u8[8192]{0}', space=vmem, size = 0x2000, scoped, tag = 'input window, operand 13, single buffered']
    #allocation4 [shape = 's32[2]{0}', space=sflag, size = 0x8, scoped, tag = 'scoped memory for tpu_custom_call.1']
    #allocation5 [shape = 's32[2]{0}', space=sflag, size = 0x8, scoped, tag = 'scoped memory for tpu_custom_call.1']
    #allocation6 [shape = 'u8[8192]{0}', space=vmem, size = 0x2000, scoped, tag = 'output window, operand 0']
    %22 = vsyncpa [#allocation4], 0
    %23 = vsyncpa [#allocation5], 0
    %s24 = scalar_lea.sflag [#allocation5], 1
    %25 = vsyncpa %s24, 0
    loop: start=0, step=1, limit=4
    $region2: #{tpu_custom_call.1} parent=1 // loop_pre_header
      _
    $region3: #{tpu_custom_call.1} parent=1 // loop_header
      %s27 = sphi 0, %s31
      %p28 = scmp.ge.s32.totalorder %s27, 4
      %s37 = sphi 0, %s39
      %s40 = sphi 0, %s37
      %s41 = sphi 0, %s40
      %s57 = sphi 0, %s41
      %s61 = sphi 0, %s61
      %s63 = sphi 0, %s61
      %s64 = sphi 0, %s63
      %s78 = sphi 0, %s64
      %s82 = sphi 0, %s82
      %s84 = sphi 0, %s82
      %s85 = sphi 0, %s84
      %s99 = sphi 0, %s85
      %s103 = sphi 0, %s103
      %s105 = sphi 0, %s103
      %s106 = sphi 0, %s105
      %s120 = sphi 0, %s106
      %s124 = sphi 0, %s124
      %s126 = sphi 0, %s124
      %s127 = sphi 0, %s126
      %s141 = sphi 0, %s127
      %s145 = sphi 0, %s145
      %s147 = sphi 0, %s145
      %s148 = sphi 0, %s147
      %s162 = sphi 0, %s148
      %s166 = sphi 0, %s166
      %s168 = sphi 0, %s166
      %s169 = sphi 0, %s168
      %s183 = sphi 0, %s169
      %s187 = sphi 0, %s187
      %s189 = sphi 0, %s187
      %s190 = sphi 0, %s189
      %s204 = sphi 0, %s190
      %s208 = sphi 0, %s208
      %s210 = sphi 0, %s208
      %s211 = sphi 0, %s210
      %s225 = sphi 0, %s211
      %s229 = sphi 0, %s229
      %s231 = sphi 0, %s229
      %s232 = sphi 0, %s231
      %s246 = sphi 0, %s232
      %s250 = sphi 0, %s250
      %s252 = sphi 0, %s250
      %s253 = sphi 0, %s252
      %s267 = sphi 0, %s253
      %s271 = sphi 0, %s271
      %s273 = sphi 0, %s271
      %s274 = sphi 0, %s273
      %s288 = sphi 0, %s274
      %s292 = sphi 0, %s292
      %s294 = sphi 0, %s292
      %s295 = sphi 0, %s294
      %s309 = sphi 0, %s295
      %s313 = sphi 0, %s313
      %s315 = sphi 0, %s313
      %s316 = sphi 0, %s315
      %s330 = sphi 0, %s316
      %s334 = sphi 0, %s334
      %s336 = sphi 0, %s334
      %s337 = sphi 0, %s336
      %s351 = sphi 0, %s337
      %s355 = sphi 0, %s355
      %s357 = sphi 0, %s355
      %s358 = sphi 0, %s357
      %s372 = sphi 0, %s358
      %s376 = sphi 0, %s376
      %s378 = sphi 0, %s376
      %s379 = sphi 0, %s378
      %s393 = sphi 0, %s379
      %s399 = sphi 0, %s401
      %s402 = sphi 0, %s399
      %s403 = sphi 0, %s402
      %s419 = sphi 0, %s403
    $region4: #{tpu_custom_call.1} parent=1 // loop_header_branch
      %30 = sbr.rel (%p28) target = $region8
    $region5: #{tpu_custom_call.1} parent=1 // loop_body
      %s32 = ssub.s32 %s27, 1
      %s33 = ssub.s32 %s27, 2
      %s34 = sadd.s32 %s27, 1
      %s35 = ssub.s32 %s27, %s34
      %p36 = scmp.eq.s32.totalorder %s35, 0
      %s38 = sadd.s32 %s37, 1
      %s39 = scalar_select %p36, %s37, %s38
      %p42 = pneg %p36
      %p43 = scmp.eq.s32.totalorder %s27, 1
      %p44 = por %p42, %p43
      %p45 = scmp.ne.s32.totalorder %s37, %s40
      %p46 = scmp.eq.s32.totalorder %s27, 0
      %p47 = por %p45, %p46
      %p48 = scmp.ne.s32.totalorder %s37, %s40
      %p49 = scmp.eq.s32.totalorder %s32, 1
      %p50 = por %p48, %p49
      %p51 = scmp.ne.s32.totalorder %s40, %s41
      %p52 = scmp.eq.s32.totalorder %s32, 0
      %p53 = por %p51, %p52
      %p54 = scmp.ne.s32.totalorder %s40, %s41
      %p55 = scmp.eq.s32.totalorder %s33, 1
      %p56 = por %p54, %p55
      %p58 = scmp.ne.s32.totalorder %s41, %s57
      %p59 = scmp.eq.s32.totalorder %s33, 0
      %p60 = por %p58, %p59
      %s62 = sadd.s32 %s61, 1
      %p65 = scmp.eq.s32.totalorder %s27, 1
      %p66 = scmp.ne.s32.totalorder %s61, %s63
      %p67 = scmp.eq.s32.totalorder %s27, 0
      %p68 = por %p66, %p67
      %p69 = scmp.ne.s32.totalorder %s61, %s63
      %p70 = scmp.eq.s32.totalorder %s32, 1
      %p71 = por %p69, %p70
      %p72 = scmp.ne.s32.totalorder %s63, %s64
      %p73 = scmp.eq.s32.totalorder %s32, 0
      %p74 = por %p72, %p73
      %p75 = scmp.ne.s32.totalorder %s63, %s64
      %p76 = scmp.eq.s32.totalorder %s33, 1
      %p77 = por %p75, %p76
      %p79 = scmp.ne.s32.totalorder %s64, %s78
      %p80 = scmp.eq.s32.totalorder %s33, 0
      %p81 = por %p79, %p80
      %s83 = sadd.s32 %s82, 1
      %p86 = scmp.eq.s32.totalorder %s27, 1
      %p87 = scmp.ne.s32.totalorder %s82, %s84
      %p88 = scmp.eq.s32.totalorder %s27, 0
      %p89 = por %p87, %p88
      %p90 = scmp.ne.s32.totalorder %s82, %s84
      %p91 = scmp.eq.s32.totalorder %s32, 1
      %p92 = por %p90, %p91
      %p93 = scmp.ne.s32.totalorder %s84, %s85
      %p94 = scmp.eq.s32.totalorder %s32, 0
      %p95 = por %p93, %p94
      %p96 = scmp.ne.s32.totalorder %s84, %s85
      %p97 = scmp.eq.s32.totalorder %s33, 1
      %p98 = por %p96, %p97
      %p100 = scmp.ne.s32.totalorder %s85, %s99
      %p101 = scmp.eq.s32.totalorder %s33, 0
      %p102 = por %p100, %p101
      %s104 = sadd.s32 %s103, 1
      %p107 = scmp.eq.s32.totalorder %s27, 1
      %p108 = scmp.ne.s32.totalorder %s103, %s105
      %p109 = scmp.eq.s32.totalorder %s27, 0
      %p110 = por %p108, %p109
      %p111 = scmp.ne.s32.totalorder %s103, %s105
      %p112 = scmp.eq.s32.totalorder %s32, 1
      %p113 = por %p111, %p112
      %p114 = scmp.ne.s32.totalorder %s105, %s106
      %p115 = scmp.eq.s32.totalorder %s32, 0
      %p116 = por %p114, %p115
      %p117 = scmp.ne.s32.totalorder %s105, %s106
      %p118 = scmp.eq.s32.totalorder %s33, 1
      %p119 = por %p117, %p118
      %p121 = scmp.ne.s32.totalorder %s106, %s120
      %p122 = scmp.eq.s32.totalorder %s33, 0
      %p123 = por %p121, %p122
      %s125 = sadd.s32 %s124, 1
      %p128 = scmp.eq.s32.totalorder %s27, 1
      %p129 = scmp.ne.s32.totalorder %s124, %s126
      %p130 = scmp.eq.s32.totalorder %s27, 0
      %p131 = por %p129, %p130
      %p132 = scmp.ne.s32.totalorder %s124, %s126
      %p133 = scmp.eq.s32.totalorder %s32, 1
      %p134 = por %p132, %p133
      %p135 = scmp.ne.s32.totalorder %s126, %s127
      %p136 = scmp.eq.s32.totalorder %s32, 0
      %p137 = por %p135, %p136
      %p138 = scmp.ne.s32.totalorder %s126, %s127
      %p139 = scmp.eq.s32.totalorder %s33, 1
      %p140 = por %p138, %p139
      %p142 = scmp.ne.s32.totalorder %s127, %s141
      %p143 = scmp.eq.s32.totalorder %s33, 0
      %p144 = por %p142, %p143
      %s146 = sadd.s32 %s145, 1
      %p149 = scmp.eq.s32.totalorder %s27, 1
      %p150 = scmp.ne.s32.totalorder %s145, %s147
      %p151 = scmp.eq.s32.totalorder %s27, 0
      %p152 = por %p150, %p151
      %p153 = scmp.ne.s32.totalorder %s145, %s147
      %p154 = scmp.eq.s32.totalorder %s32, 1
      %p155 = por %p153, %p154
      %p156 = scmp.ne.s32.totalorder %s147, %s148
      %p157 = scmp.eq.s32.totalorder %s32, 0
      %p158 = por %p156, %p157
      %p159 = scmp.ne.s32.totalorder %s147, %s148
      %p160 = scmp.eq.s32.totalorder %s33, 1
      %p161 = por %p159, %p160
      %p163 = scmp.ne.s32.totalorder %s148, %s162
      %p164 = scmp.eq.s32.totalorder %s33, 0
      %p165 = por %p163, %p164
      %s167 = sadd.s32 %s166, 1
      %p170 = scmp.eq.s32.totalorder %s27, 1
      %p171 = scmp.ne.s32.totalorder %s166, %s168
      %p172 = scmp.eq.s32.totalorder %s27, 0
      %p173 = por %p171, %p172
      %p174 = scmp.ne.s32.totalorder %s166, %s168
      %p175 = scmp.eq.s32.totalorder %s32, 1
      %p176 = por %p174, %p175
      %p177 = scmp.ne.s32.totalorder %s168, %s169
      %p178 = scmp.eq.s32.totalorder %s32, 0
      %p179 = por %p177, %p178
      %p180 = scmp.ne.s32.totalorder %s168, %s169
      %p181 = scmp.eq.s32.totalorder %s33, 1
      %p182 = por %p180, %p181
      %p184 = scmp.ne.s32.totalorder %s169, %s183
      %p185 = scmp.eq.s32.totalorder %s33, 0
      %p186 = por %p184, %p185
      %s188 = sadd.s32 %s187, 1
      %p191 = scmp.eq.s32.totalorder %s27, 1
      %p192 = scmp.ne.s32.totalorder %s187, %s189
      %p193 = scmp.eq.s32.totalorder %s27, 0
      %p194 = por %p192, %p193
      %p195 = scmp.ne.s32.totalorder %s187, %s189
      %p196 = scmp.eq.s32.totalorder %s32, 1
      %p197 = por %p195, %p196
      %p198 = scmp.ne.s32.totalorder %s189, %s190
      %p199 = scmp.eq.s32.totalorder %s32, 0
      %p200 = por %p198, %p199
      %p201 = scmp.ne.s32.totalorder %s189, %s190
      %p202 = scmp.eq.s32.totalorder %s33, 1
      %p203 = por %p201, %p202
      %p205 = scmp.ne.s32.totalorder %s190, %s204
      %p206 = scmp.eq.s32.totalorder %s33, 0
      %p207 = por %p205, %p206
      %s209 = sadd.s32 %s208, 1
      %p212 = scmp.eq.s32.totalorder %s27, 1
      %p213 = scmp.ne.s32.totalorder %s208, %s210
      %p214 = scmp.eq.s32.totalorder %s27, 0
      %p215 = por %p213, %p214
      %p216 = scmp.ne.s32.totalorder %s208, %s210
      %p217 = scmp.eq.s32.totalorder %s32, 1
      %p218 = por %p216, %p217
      %p219 = scmp.ne.s32.totalorder %s210, %s211
      %p220 = scmp.eq.s32.totalorder %s32, 0
      %p221 = por %p219, %p220
      %p222 = scmp.ne.s32.totalorder %s210, %s211
      %p223 = scmp.eq.s32.totalorder %s33, 1
      %p224 = por %p222, %p223
      %p226 = scmp.ne.s32.totalorder %s211, %s225
      %p227 = scmp.eq.s32.totalorder %s33, 0
      %p228 = por %p226, %p227
      %s230 = sadd.s32 %s229, 1
      %p233 = scmp.eq.s32.totalorder %s27, 1
      %p234 = scmp.ne.s32.totalorder %s229, %s231
      %p235 = scmp.eq.s32.totalorder %s27, 0
      %p236 = por %p234, %p235
      %p237 = scmp.ne.s32.totalorder %s229, %s231
      %p238 = scmp.eq.s32.totalorder %s32, 1
      %p239 = por %p237, %p238
      %p240 = scmp.ne.s32.totalorder %s231, %s232
      %p241 = scmp.eq.s32.totalorder %s32, 0
      %p242 = por %p240, %p241
      %p243 = scmp.ne.s32.totalorder %s231, %s232
      %p244 = scmp.eq.s32.totalorder %s33, 1
      %p245 = por %p243, %p244
      %p247 = scmp.ne.s32.totalorder %s232, %s246
      %p248 = scmp.eq.s32.totalorder %s33, 0
      %p249 = por %p247, %p248
      %s251 = sadd.s32 %s250, 1
      %p254 = scmp.eq.s32.totalorder %s27, 1
      %p255 = scmp.ne.s32.totalorder %s250, %s252
      %p256 = scmp.eq.s32.totalorder %s27, 0
      %p257 = por %p255, %p256
      %p258 = scmp.ne.s32.totalorder %s250, %s252
      %p259 = scmp.eq.s32.totalorder %s32, 1
      %p260 = por %p258, %p259
      %p261 = scmp.ne.s32.totalorder %s252, %s253
      %p262 = scmp.eq.s32.totalorder %s32, 0
      %p263 = por %p261, %p262
      %p264 = scmp.ne.s32.totalorder %s252, %s253
      %p265 = scmp.eq.s32.totalorder %s33, 1
      %p266 = por %p264, %p265
      %p268 = scmp.ne.s32.totalorder %s253, %s267
      %p269 = scmp.eq.s32.totalorder %s33, 0
      %p270 = por %p268, %p269
      %s272 = sadd.s32 %s271, 1
      %p275 = scmp.eq.s32.totalorder %s27, 1
      %p276 = scmp.ne.s32.totalorder %s271, %s273
      %p277 = scmp.eq.s32.totalorder %s27, 0
      %p278 = por %p276, %p277
      %p279 = scmp.ne.s32.totalorder %s271, %s273
      %p280 = scmp.eq.s32.totalorder %s32, 1
      %p281 = por %p279, %p280
      %p282 = scmp.ne.s32.totalorder %s273, %s274
      %p283 = scmp.eq.s32.totalorder %s32, 0
      %p284 = por %p282, %p283
      %p285 = scmp.ne.s32.totalorder %s273, %s274
      %p286 = scmp.eq.s32.totalorder %s33, 1
      %p287 = por %p285, %p286
      %p289 = scmp.ne.s32.totalorder %s274, %s288
      %p290 = scmp.eq.s32.totalorder %s33, 0
      %p291 = por %p289, %p290
      %s293 = sadd.s32 %s292, 1
      %p296 = scmp.eq.s32.totalorder %s27, 1
      %p297 = scmp.ne.s32.totalorder %s292, %s294
      %p298 = scmp.eq.s32.totalorder %s27, 0
      %p299 = por %p297, %p298
      %p300 = scmp.ne.s32.totalorder %s292, %s294
      %p301 = scmp.eq.s32.totalorder %s32, 1
      %p302 = por %p300, %p301
      %p303 = scmp.ne.s32.totalorder %s294, %s295
      %p304 = scmp.eq.s32.totalorder %s32, 0
      %p305 = por %p303, %p304
      %p306 = scmp.ne.s32.totalorder %s294, %s295
      %p307 = scmp.eq.s32.totalorder %s33, 1
      %p308 = por %p306, %p307
      %p310 = scmp.ne.s32.totalorder %s295, %s309
      %p311 = scmp.eq.s32.totalorder %s33, 0
      %p312 = por %p310, %p311
      %s314 = sadd.s32 %s313, 1
      %p317 = scmp.eq.s32.totalorder %s27, 1
      %p318 = scmp.ne.s32.totalorder %s313, %s315
      %p319 = scmp.eq.s32.totalorder %s27, 0
      %p320 = por %p318, %p319
      %p321 = scmp.ne.s32.totalorder %s313, %s315
      %p322 = scmp.eq.s32.totalorder %s32, 1
      %p323 = por %p321, %p322
      %p324 = scmp.ne.s32.totalorder %s315, %s316
      %p325 = scmp.eq.s32.totalorder %s32, 0
      %p326 = por %p324, %p325
      %p327 = scmp.ne.s32.totalorder %s315, %s316
      %p328 = scmp.eq.s32.totalorder %s33, 1
      %p329 = por %p327, %p328
      %p331 = scmp.ne.s32.totalorder %s316, %s330
      %p332 = scmp.eq.s32.totalorder %s33, 0
      %p333 = por %p331, %p332
      %s335 = sadd.s32 %s334, 1
      %p338 = scmp.eq.s32.totalorder %s27, 1
      %p339 = scmp.ne.s32.totalorder %s334, %s336
      %p340 = scmp.eq.s32.totalorder %s27, 0
      %p341 = por %p339, %p340
      %p342 = scmp.ne.s32.totalorder %s334, %s336
      %p343 = scmp.eq.s32.totalorder %s32, 1
      %p344 = por %p342, %p343
      %p345 = scmp.ne.s32.totalorder %s336, %s337
      %p346 = scmp.eq.s32.totalorder %s32, 0
      %p347 = por %p345, %p346
      %p348 = scmp.ne.s32.totalorder %s336, %s337
      %p349 = scmp.eq.s32.totalorder %s33, 1
      %p350 = por %p348, %p349
      %p352 = scmp.ne.s32.totalorder %s337, %s351
      %p353 = scmp.eq.s32.totalorder %s33, 0
      %p354 = por %p352, %p353
      %s356 = sadd.s32 %s355, 1
      %p359 = scmp.eq.s32.totalorder %s27, 1
      %p360 = scmp.ne.s32.totalorder %s355, %s357
      %p361 = scmp.eq.s32.totalorder %s27, 0
      %p362 = por %p360, %p361
      %p363 = scmp.ne.s32.totalorder %s355, %s357
      %p364 = scmp.eq.s32.totalorder %s32, 1
      %p365 = por %p363, %p364
      %p366 = scmp.ne.s32.totalorder %s357, %s358
      %p367 = scmp.eq.s32.totalorder %s32, 0
      %p368 = por %p366, %p367
      %p369 = scmp.ne.s32.totalorder %s357, %s358
      %p370 = scmp.eq.s32.totalorder %s33, 1
      %p371 = por %p369, %p370
      %p373 = scmp.ne.s32.totalorder %s358, %s372
      %p374 = scmp.eq.s32.totalorder %s33, 0
      %p375 = por %p373, %p374
      %s377 = sadd.s32 %s376, 1
      %p380 = scmp.eq.s32.totalorder %s27, 1
      %p381 = scmp.ne.s32.totalorder %s376, %s378
      %p382 = scmp.eq.s32.totalorder %s27, 0
      %p383 = por %p381, %p382
      %p384 = scmp.ne.s32.totalorder %s376, %s378
      %p385 = scmp.eq.s32.totalorder %s32, 1
      %p386 = por %p384, %p385
      %p387 = scmp.ne.s32.totalorder %s378, %s379
      %p388 = scmp.eq.s32.totalorder %s32, 0
      %p389 = por %p387, %p388
      %p390 = scmp.ne.s32.totalorder %s378, %s379
      %p391 = scmp.eq.s32.totalorder %s33, 1
      %p392 = por %p390, %p391
      %p394 = scmp.ne.s32.totalorder %s379, %s393
      %p395 = scmp.eq.s32.totalorder %s33, 0
      %p396 = por %p394, %p395
      %s397 = ssub.s32 %s27, %s34
      %p398 = scmp.eq.s32.totalorder %s397, 0
      %s400 = sadd.s32 %s399, 1
      %s401 = scalar_select %p398, %s399, %s400
      %p404 = pneg %p398
      %p405 = scmp.eq.s32.totalorder %s27, 1
      %p406 = por %p404, %p405
      %p407 = scmp.ne.s32.totalorder %s399, %s402
      %p408 = scmp.eq.s32.totalorder %s27, 0
      %p409 = por %p407, %p408
      %p410 = scmp.ne.s32.totalorder %s399, %s402
      %p411 = scmp.eq.s32.totalorder %s32, 1
      %p412 = por %p410, %p411
      %p413 = scmp.ne.s32.totalorder %s402, %s403
      %p414 = scmp.eq.s32.totalorder %s32, 0
      %p415 = por %p413, %p414
      %p416 = scmp.ne.s32.totalorder %s402, %s403
      %p417 = scmp.eq.s32.totalorder %s33, 1
      %p418 = por %p416, %p417
      %p420 = scmp.ne.s32.totalorder %s403, %s419
      %p421 = scmp.eq.s32.totalorder %s33, 0
      %p422 = por %p420, %p421
      %p423 = scmp.le.s32.totalorder 1, %s27
      %p424 = scmp.lt.s32.totalorder %s27, 3
      %p425 = pnand %p423, %p424
      %p426 = pneg %p425
      // Predicated region
      $region9: #{tpu_custom_call.1} parent=5 // pred_check
        _
      $region10: #{tpu_custom_call.1} parent=5 // pred_check_branch
        %428 = sbr.rel (%p425) target = $region12
      $region11: #{tpu_custom_call.1} parent=5 // pred_region
        %s429 = ssub.s32 %s27, 1
        // Predicated region
        $region13: #{tpu_custom_call.1} parent=11 // pred_check
          %p430 = pneg %p74
        $region14: #{tpu_custom_call.1} parent=11 // pred_check_branch
          %432 = sbr.rel (%p430) target = $region16
        $region15: #{tpu_custom_call.1} parent=11 // pred_region
          _
        $region16: #{tpu_custom_call.1} parent=11 // pred_fallthru
          _
        // Predicated region
        $region17: #{tpu_custom_call.1} parent=11 // pred_check
          %p433 = pneg %p95
        $region18: #{tpu_custom_call.1} parent=11 // pred_check_branch
          %435 = sbr.rel (%p433) target = $region20
        $region19: #{tpu_custom_call.1} parent=11 // pred_region
          _
        $region20: #{tpu_custom_call.1} parent=11 // pred_fallthru
          _
        // Predicated region
        $region21: #{tpu_custom_call.1} parent=11 // pred_check
          %p436 = pneg %p116
        $region22: #{tpu_custom_call.1} parent=11 // pred_check_branch
          %438 = sbr.rel (%p436) target = $region24
        $region23: #{tpu_custom_call.1} parent=11 // pred_region
          _
        $region24: #{tpu_custom_call.1} parent=11 // pred_fallthru
          _
        // Predicated region
        $region25: #{tpu_custom_call.1} parent=11 // pred_check
          %p439 = pneg %p137
        $region26: #{tpu_custom_call.1} parent=11 // pred_check_branch
          %441 = sbr.rel (%p439) target = $region28
        $region27: #{tpu_custom_call.1} parent=11 // pred_region
          _
        $region28: #{tpu_custom_call.1} parent=11 // pred_fallthru
          _
        // Predicated region
        $region29: #{tpu_custom_call.1} parent=11 // pred_check
          %p442 = pneg %p158
        $region30: #{tpu_custom_call.1} parent=11 // pred_check_branch
          %444 = sbr.rel (%p442) target = $region32
        $region31: #{tpu_custom_call.1} parent=11 // pred_region
          _
        $region32: #{tpu_custom_call.1} parent=11 // pred_fallthru
          _
        // Predicated region
        $region33: #{tpu_custom_call.1} parent=11 // pred_check
          %p445 = pneg %p179
        $region34: #{tpu_custom_call.1} parent=11 // pred_check_branch
          %447 = sbr.rel (%p445) target = $region36
        $region35: #{tpu_custom_call.1} parent=11 // pred_region
          _
        $region36: #{tpu_custom_call.1} parent=11 // pred_fallthru
          _
        // Predicated region
        $region37: #{tpu_custom_call.1} parent=11 // pred_check
          %p448 = pneg %p200
        $region38: #{tpu_custom_call.1} parent=11 // pred_check_branch
          %450 = sbr.rel (%p448) target = $region40
        $region39: #{tpu_custom_call.1} parent=11 // pred_region
          _
        $region40: #{tpu_custom_call.1} parent=11 // pred_fallthru
          _
        // Predicated region
        $region41: #{tpu_custom_call.1} parent=11 // pred_check
          %p451 = pneg %p221
        $region42: #{tpu_custom_call.1} parent=11 // pred_check_branch
          %453 = sbr.rel (%p451) target = $region44
        $region43: #{tpu_custom_call.1} parent=11 // pred_region
          _
        $region44: #{tpu_custom_call.1} parent=11 // pred_fallthru
          _
        // Predicated region
        $region45: #{tpu_custom_call.1} parent=11 // pred_check
          %p454 = pneg %p242
        $region46: #{tpu_custom_call.1} parent=11 // pred_check_branch
          %456 = sbr.rel (%p454) target = $region48
        $region47: #{tpu_custom_call.1} parent=11 // pred_region
          _
        $region48: #{tpu_custom_call.1} parent=11 // pred_fallthru
          _
        // Predicated region
        $region49: #{tpu_custom_call.1} parent=11 // pred_check
          %p457 = pneg %p263
        $region50: #{tpu_custom_call.1} parent=11 // pred_check_branch
          %459 = sbr.rel (%p457) target = $region52
        $region51: #{tpu_custom_call.1} parent=11 // pred_region
          _
        $region52: #{tpu_custom_call.1} parent=11 // pred_fallthru
          _
        // Predicated region
        $region53: #{tpu_custom_call.1} parent=11 // pred_check
          %p460 = pneg %p284
        $region54: #{tpu_custom_call.1} parent=11 // pred_check_branch
          %462 = sbr.rel (%p460) target = $region56
        $region55: #{tpu_custom_call.1} parent=11 // pred_region
          _
        $region56: #{tpu_custom_call.1} parent=11 // pred_fallthru
          _
        // Predicated region
        $region57: #{tpu_custom_call.1} parent=11 // pred_check
          %p463 = pneg %p305
        $region58: #{tpu_custom_call.1} parent=11 // pred_check_branch
          %465 = sbr.rel (%p463) target = $region60
        $region59: #{tpu_custom_call.1} parent=11 // pred_region
          _
        $region60: #{tpu_custom_call.1} parent=11 // pred_fallthru
          _
        // Predicated region
        $region61: #{tpu_custom_call.1} parent=11 // pred_check
          %p466 = pneg %p326
        $region62: #{tpu_custom_call.1} parent=11 // pred_check_branch
          %468 = sbr.rel (%p466) target = $region64
        $region63: #{tpu_custom_call.1} parent=11 // pred_region
          %s470 = ssub.s32 256, 256
          %471 = vsyncadd [#allocation4], %s470
          %s472 = sshll.u32 [#allocation3], 4
          %s473 = int_to_ptr.vmem [resolvable:$true] %s472
          %478 = dma.hbm_to_vmem [thread:$0]  %s13, 256, %s473, [#allocation4], 64, 64, 4
        $region64: #{tpu_custom_call.1} parent=11 // pred_fallthru
          _
        // Predicated region
        $region65: #{tpu_custom_call.1} parent=11 // pred_check
          %p479 = pneg %p347
        $region66: #{tpu_custom_call.1} parent=11 // pred_check_branch
          %481 = sbr.rel (%p479) target = $region68
        $region67: #{tpu_custom_call.1} parent=11 // pred_region
          _
        $region68: #{tpu_custom_call.1} parent=11 // pred_fallthru
          _
        // Predicated region
        $region69: #{tpu_custom_call.1} parent=11 // pred_check
          %p482 = pneg %p368
        $region70: #{tpu_custom_call.1} parent=11 // pred_check_branch
          %484 = sbr.rel (%p482) target = $region72
        $region71: #{tpu_custom_call.1} parent=11 // pred_region
          _
        $region72: #{tpu_custom_call.1} parent=11 // pred_fallthru
          _
        // Predicated region
        $region73: #{tpu_custom_call.1} parent=11 // pred_check
          %p485 = pneg %p389
        $region74: #{tpu_custom_call.1} parent=11 // pred_check_branch
          %487 = sbr.rel (%p485) target = $region76
        $region75: #{tpu_custom_call.1} parent=11 // pred_region
          _
        $region76: #{tpu_custom_call.1} parent=11 // pred_fallthru
          _
      $region12: #{tpu_custom_call.1} parent=5 // pred_fallthru
        _
      %p488 = scmp.lt.s32.totalorder %s27, 2
      // Predicated region
      $region77: #{tpu_custom_call.1} parent=5 // pred_check
        %p489 = pneg %p488
      $region78: #{tpu_custom_call.1} parent=5 // pred_check_branch
        %491 = sbr.rel (%p489) target = $region80
      $region79: #{tpu_custom_call.1} parent=5 // pred_region
        // Predicated region
        $region81: #{tpu_custom_call.1} parent=79 // pred_check
          %p492 = pneg %p47
        $region82: #{tpu_custom_call.1} parent=79 // pred_check_branch
          %494 = sbr.rel (%p492) target = $region84
        $region83: #{tpu_custom_call.1} parent=79 // pred_region
          %p495 = scmp.lt.s32.totalorder %s27, 1
          %s496 = scalar_select %p495, %s27, 1
          %s497 = smul.addr %s496, 8
          %s498 = scalar_lea.vmem %s0, %s497
        $region84: #{tpu_custom_call.1} parent=79 // pred_fallthru
          _
      $region80: #{tpu_custom_call.1} parent=5 // pred_fallthru
        _
      %p499 = scmp.le.s32.totalorder 1, %s27
      %p500 = scmp.lt.s32.totalorder %s27, 3
      %p501 = pnand %p499, %p500
      %p502 = pneg %p501
      // Predicated region
      $region85: #{tpu_custom_call.1} parent=5 // pred_check
        _
      $region86: #{tpu_custom_call.1} parent=5 // pred_check_branch
        %504 = sbr.rel (%p501) target = $region88
      $region87: #{tpu_custom_call.1} parent=5 // pred_region
        %s505 = ssub.s32 %s27, 1
        // Predicated region
        $region89: #{tpu_custom_call.1} parent=87 // pred_check
          %p506 = pneg %p326
        $region90: #{tpu_custom_call.1} parent=87 // pred_check_branch
          %508 = sbr.rel (%p506) target = $region92
        $region91: #{tpu_custom_call.1} parent=87 // pred_region
          %509 = dma.done [#allocation4], 256
        $region92: #{tpu_custom_call.1} parent=87 // pred_fallthru
          _
        %p510 = scmp.lt.s32.totalorder %s32, 1
        %s511 = scalar_select %p510, %s32, 1
        %s512 = smul.addr %s511, 8
        %s513 = scalar_lea.vmem %s0, %s512
        %p514 = pneg %p53
        %p515 = pneg %p50
        %p516 = pneg %p74
        %p517 = pneg %p71
        %p518 = pneg %p95
        %p519 = pneg %p92
        %p520 = pneg %p116
        %p521 = pneg %p113
        %p522 = pneg %p137
        %p523 = pneg %p134
        %p524 = pneg %p158
        %p525 = pneg %p155
        %p526 = pneg %p179
        %p527 = pneg %p176
        %p528 = pneg %p200
        %p529 = pneg %p197
        %p530 = pneg %p221
        %p531 = pneg %p218
        %p532 = pneg %p242
        %p533 = pneg %p239
        %p534 = pneg %p263
        %p535 = pneg %p260
        %p536 = pneg %p284
        %p537 = pneg %p281
        %p538 = pneg %p305
        %p539 = pneg %p302
        %p540 = pneg %p326
        %p541 = pneg %p323
        %p542 = pneg %p347
        %p543 = pneg %p344
        %p544 = pneg %p368
        %p545 = pneg %p365
        %p546 = pneg %p389
        %p547 = pneg %p386
        %p548 = pneg %p415
        %p549 = pneg %p412
        %s550 = sand.u32 %s402, 1
        %s551 = scalar_lea.sflag [#allocation5], %s550
        %s552 = sand.u32 %s402, 1
        %s553 = smul.addr %s552, 8
        %s554 = scalar_lea.vmem [#allocation6], %s553
        %p555 = scmp.lt.s32.totalorder %s32, 1
        %s556 = scalar_select %p555, %s32, 1
        %s557 = smul.addr %s556, 8
        %s558 = scalar_lea.vmem %s0, %s557
        %v560 = vld [vmem:[%s558] sm:$0xff]
        %v561 = vld [vmem:[%s1] sm:$0x1]
        %v562 = vld [vmem:[%s2] sm:$0x1]
        %vm563 = vcmask 261120
        %v564 = vsel %vm563, %v560, 0.0
        %565 = vadd.xlane.f32.xlu0 %v564
        %v566 = vpop.xlane.xlu0 %565
        %v567 = vrcp.pop 32.0
        %v568 = vmul.f32 %v566, %v567
        %v569 = vsub.f32 %v560, %v568
        %v570 = vmul.f32 %v569, %v569
        %v571 = vsel %vm563, %v570, 0.0
        %572 = vadd.xlane.f32.xlu0 %v571
        %v573 = vpop.xlane.xlu0 %572
        %v574 = vmul.f32 %v573, %v567
        %v575 = vadd.f32 %v574, 1e-05
        %v576 = vrsqrt.pop %v575
        %v577 = vmul.f32 %v569, %v576
        %v579 = vlaneseq
        %v580 = vshrl.u32 %v579, 7
        %v581 = vsub.s32 0, %v580
        %v582 = vrot.slane %v561, %v581
        %v584 = vmul.f32 %v577, %v582
        %v586 = vlaneseq
        %v587 = vshrl.u32 %v586, 7
        %v588 = vsub.s32 0, %v587
        %v589 = vrot.slane %v562, %v588
        %v591 = vadd.f32 %v584, %v589
        %v592 = vpack.c.bf16 %v591, %v591
        %v593 = vld [vmem:[%s3] sm:$0xf]
        %v594 = vld [vmem:[%s3 + $0x4] sm:$0xf]
        %v595 = vld [vmem:[%s3 + $0x8] sm:$0xf]
        %v596 = vld [vmem:[%s3 + $0xc] sm:$0xf]
        %v597 = vld [vmem:[%s4] sm:$0x1]
        %v599 = vlaneseq
        %v600 = vshrl.u32 %v599, 7
        %v601 = vsub.s32 0, %v600
        %v602 = vrot.slane %v597, %v601
        %v608 = vunpack.c.l.b16 %v593
        %v609 = vunpack.c.l.b16 %v594
        %v610 = vunpack.c.l.b16 %v595
        %v611 = vunpack.c.l.b16 %v596
        %v612 = vpack.c.b16 %v609, %v608
        %v613 = vpack.c.b16 %v611, %v610
        %v617 = vsel %vm563, %v592, 0
        %619 = vmatprep.subr.bf16.mxu0 0
        %620 = vmatpush1.bf16.msra.mxu0 0
        %621 = vmatprep.subr.bf16.mxu0 0
        %622 = vmatpush1.bf16.msra.mxu0 0
        %623 = vmatprep.subr.bf16.mxu0 0
        %624 = vmatpush1.bf16.msra.mxu0 0
        %625 = vmatprep.subr.bf16.mxu0 0
        %626 = vmatpush1.bf16.msra.mxu0 0
        %627 = vmatprep.subr.bf16.mxu0 0
        %628 = vmatpush1.bf16.msra.mxu0 0
        %629 = vmatprep.subr.bf16.mxu0 0
        %630 = vmatpush1.bf16.msra.mxu0 0
        %631 = vmatprep.subr.bf16.mxu0 0
        %632 = vmatpush1.bf16.msra.mxu0 %v613
        %633 = vmatprep.subr.bf16.mxu0 0
        %634 = vmatpush1.bf16.msra.mxu0 %v612
        %635 = vmatprep.subr.bf16.mxu0 0
        %636 = vmatpush2.bf16.msra.mxu0 0
        %637 = vmatprep.subr.bf16.mxu0 0
        %638 = vmatpush2.bf16.msra.mxu0 0
        %639 = vmatprep.subr.bf16.mxu0 0
        %640 = vmatpush2.bf16.msra.mxu0 0
        %641 = vmatprep.subr.bf16.mxu0 0
        %642 = vmatpush2.bf16.msra.mxu0 0
        %643 = vmatprep.subr.bf16.mxu0 0
        %644 = vmatpush2.bf16.msra.mxu0 0
        %645 = vmatprep.subr.bf16.mxu0 0
        %646 = vmatpush2.bf16.msra.mxu0 0
        %647 = vmatprep.subr.bf16.mxu0 0
        %648 = vmatpush2.bf16.msra.mxu0 0
        %649 = vmatprep.subr.bf16.mxu0 0
        %650 = vmatpush2.bf16.msra.mxu0 0
        %651 = vmatprep.mubr.bf16.mxu0 0
        %652 = vmatmul.mubr.bf16.gmra.mxu0 %v617
        %v653 = vpop.f32.mrf.mxu0
        %v654 = vadd.f32 %v602, %v653
        %v655 = vpop.f32.mrf.mxu0
        %v656 = vpop.f32.mrf.mxu0
        %v657 = vpop.f32.mrf.mxu0
        %658 = vdwg.mxu0
        %v659 = vld [vmem:[%s5] sm:$0xf]
        %v660 = vld [vmem:[%s5 + $0x4] sm:$0xf]
        %v661 = vld [vmem:[%s5 + $0x8] sm:$0xf]
        %v662 = vld [vmem:[%s5 + $0xc] sm:$0xf]
        %v663 = vld [vmem:[%s6] sm:$0x1]
        %v665 = vlaneseq
        %v666 = vshrl.u32 %v665, 7
        %v667 = vsub.s32 0, %v666
        %v668 = vrot.slane %v663, %v667
        %v674 = vunpack.c.l.b16 %v659
        %v675 = vunpack.c.l.b16 %v660
        %v676 = vunpack.c.l.b16 %v661
        %v677 = vunpack.c.l.b16 %v662
        %v678 = vpack.c.b16 %v675, %v674
        %v679 = vpack.c.b16 %v677, %v676
        %682 = vmatprep.subr.bf16.mxu0 0
        %683 = vmatpush1.bf16.msra.mxu0 0
        %684 = vmatprep.subr.bf16.mxu0 0
        %685 = vmatpush1.bf16.msra.mxu0 0
        %686 = vmatprep.subr.bf16.mxu0 0
        %687 = vmatpush1.bf16.msra.mxu0 0
        %688 = vmatprep.subr.bf16.mxu0 0
        %689 = vmatpush1.bf16.msra.mxu0 0
        %690 = vmatprep.subr.bf16.mxu0 0
        %691 = vmatpush1.bf16.msra.mxu0 0
        %692 = vmatprep.subr.bf16.mxu0 0
        %693 = vmatpush1.bf16.msra.mxu0 0
        %694 = vmatprep.subr.bf16.mxu0 0
        %695 = vmatpush1.bf16.msra.mxu0 %v679
        %696 = vmatprep.subr.bf16.mxu0 0
        %697 = vmatpush1.bf16.msra.mxu0 %v678
        %698 = vmatprep.subr.bf16.mxu0 0
        %699 = vmatpush2.bf16.msra.mxu0 0
        %700 = vmatprep.subr.bf16.mxu0 0
        %701 = vmatpush2.bf16.msra.mxu0 0
        %702 = vmatprep.subr.bf16.mxu0 0
        %703 = vmatpush2.bf16.msra.mxu0 0
        %704 = vmatprep.subr.bf16.mxu0 0
        %705 = vmatpush2.bf16.msra.mxu0 0
        %706 = vmatprep.subr.bf16.mxu0 0
        %707 = vmatpush2.bf16.msra.mxu0 0
        %708 = vmatprep.subr.bf16.mxu0 0
        %709 = vmatpush2.bf16.msra.mxu0 0
        %710 = vmatprep.subr.bf16.mxu0 0
        %711 = vmatpush2.bf16.msra.mxu0 0
        %712 = vmatprep.subr.bf16.mxu0 0
        %713 = vmatpush2.bf16.msra.mxu0 0
        %714 = vmatprep.mubr.bf16.mxu0 0
        %715 = vmatmul.mubr.bf16.gmra.mxu0 %v617
        %v716 = vpop.f32.mrf.mxu0
        %v717 = vadd.f32 %v668, %v716
        %v718 = vpop.f32.mrf.mxu0
        %v719 = vpop.f32.mrf.mxu0
        %v720 = vpop.f32.mrf.mxu0
        %721 = vdwg.mxu0
        %v722 = vld [vmem:[%s7] sm:$0xf]
        %v723 = vld [vmem:[%s7 + $0x4] sm:$0xf]
        %v724 = vld [vmem:[%s7 + $0x8] sm:$0xf]
        %v725 = vld [vmem:[%s7 + $0xc] sm:$0xf]
        %v726 = vld [vmem:[%s8] sm:$0x1]
        %v728 = vlaneseq
        %v729 = vshrl.u32 %v728, 7
        %v730 = vsub.s32 0, %v729
        %v731 = vrot.slane %v726, %v730
        %v737 = vunpack.c.l.b16 %v722
        %v738 = vunpack.c.l.b16 %v723
        %v739 = vunpack.c.l.b16 %v724
        %v740 = vunpack.c.l.b16 %v725
        %v741 = vpack.c.b16 %v738, %v737
        %v742 = vpack.c.b16 %v740, %v739
        %745 = vmatprep.subr.bf16.mxu0 0
        %746 = vmatpush1.bf16.msra.mxu0 0
        %747 = vmatprep.subr.bf16.mxu0 0
        %748 = vmatpush1.bf16.msra.mxu0 0
        %749 = vmatprep.subr.bf16.mxu0 0
        %750 = vmatpush1.bf16.msra.mxu0 0
        %751 = vmatprep.subr.bf16.mxu0 0
        %752 = vmatpush1.bf16.msra.mxu0 0
        %753 = vmatprep.subr.bf16.mxu0 0
        %754 = vmatpush1.bf16.msra.mxu0 0
        %755 = vmatprep.subr.bf16.mxu0 0
        %756 = vmatpush1.bf16.msra.mxu0 0
        %757 = vmatprep.subr.bf16.mxu0 0
        %758 = vmatpush1.bf16.msra.mxu0 %v742
        %759 = vmatprep.subr.bf16.mxu0 0
        %760 = vmatpush1.bf16.msra.mxu0 %v741
        %761 = vmatprep.subr.bf16.mxu0 0
        %762 = vmatpush2.bf16.msra.mxu0 0
        %763 = vmatprep.subr.bf16.mxu0 0
        %764 = vmatpush2.bf16.msra.mxu0 0
        %765 = vmatprep.subr.bf16.mxu0 0
        %766 = vmatpush2.bf16.msra.mxu0 0
        %767 = vmatprep.subr.bf16.mxu0 0
        %768 = vmatpush2.bf16.msra.mxu0 0
        %769 = vmatprep.subr.bf16.mxu0 0
        %770 = vmatpush2.bf16.msra.mxu0 0
        %771 = vmatprep.subr.bf16.mxu0 0
        %772 = vmatpush2.bf16.msra.mxu0 0
        %773 = vmatprep.subr.bf16.mxu0 0
        %774 = vmatpush2.bf16.msra.mxu0 0
        %775 = vmatprep.subr.bf16.mxu0 0
        %776 = vmatpush2.bf16.msra.mxu0 0
        %777 = vmatprep.mubr.bf16.mxu0 0
        %778 = vmatmul.mubr.bf16.gmra.mxu0 %v617
        %v779 = vpop.f32.mrf.mxu0
        %v780 = vadd.f32 %v731, %v779
        %v781 = vpop.f32.mrf.mxu0
        %v782 = vpop.f32.mrf.mxu0
        %v783 = vpop.f32.mrf.mxu0
        %784 = vdwg.mxu0
        %v785 = vmul.f32 %v654, 0.35355338
        %v786 = vpack.c.bf16 %v785, %v785
        %v787 = vpack.c.bf16 %v717, %v717
        %v788 = vpack.c.bf16 %v780, %v780
        %vm789 = vcmask 64512
        %v791 = vsel %vm789, %v786, 0
        %v794 = vsel %vm789, %v787, 0
        %796 = vmatprep.subr.bf16.mxu0 0
        %797 = vmatpush1.bf16.xpose.msra.mxu0 0
        %798 = vmatprep.subr.bf16.mxu0 0
        %799 = vmatpush1.bf16.xpose.msra.mxu0 0
        %800 = vmatprep.subr.bf16.mxu0 0
        %801 = vmatpush1.bf16.xpose.msra.mxu0 0
        %802 = vmatprep.subr.bf16.mxu0 0
        %803 = vmatpush1.bf16.xpose.msra.mxu0 0
        %804 = vmatprep.subr.bf16.mxu0 0
        %805 = vmatpush1.bf16.xpose.msra.mxu0 0
        %806 = vmatprep.subr.bf16.mxu0 0
        %807 = vmatpush1.bf16.xpose.msra.mxu0 0
        %808 = vmatprep.subr.bf16.mxu0 0
        %809 = vmatpush1.bf16.xpose.msra.mxu0 0
        %810 = vmatprep.subr.bf16.mxu0 0
        %811 = vmatpush1.bf16.xpose.msra.mxu0 %v794
        %812 = vmatprep.subr.bf16.mxu0 0
        %813 = vmatpush2.bf16.xpose.msra.mxu0 0
        %814 = vmatprep.subr.bf16.mxu0 0
        %815 = vmatpush2.bf16.xpose.msra.mxu0 0
        %816 = vmatprep.subr.bf16.mxu0 0
        %817 = vmatpush2.bf16.xpose.msra.mxu0 0
        %818 = vmatprep.subr.bf16.mxu0 0
        %819 = vmatpush2.bf16.xpose.msra.mxu0 0
        %820 = vmatprep.subr.bf16.mxu0 0
        %821 = vmatpush2.bf16.xpose.msra.mxu0 0
        %822 = vmatprep.subr.bf16.mxu0 0
        %823 = vmatpush2.bf16.xpose.msra.mxu0 0
        %824 = vmatprep.subr.bf16.mxu0 0
        %825 = vmatpush2.bf16.xpose.msra.mxu0 0
        %826 = vmatprep.subr.bf16.mxu0 0
        %827 = vmatpush2.bf16.xpose.msra.mxu0 0
        %828 = vmatprep.mubr.bf16.mxu0 0
        %829 = vmatmul.mubr.bf16.gmra.mxu0 %v791
        %v830 = vpop.f32.mrf.mxu0
        %v831 = vadd.f32 0.0, %v830
        %v832 = vpop.f32.mrf.mxu0
        %v833 = vpop.f32.mrf.mxu0
        %v834 = vpop.f32.mrf.mxu0
        %835 = vdwg.mxu0
        %v836 = vsel %vm789, %v831, -inf
        %837 = vmax.xlane.f32.xlu0 %v836
        %v838 = vpop.xlane.xlu0 %837
        %v839 = vsub.f32 %v831, %v838
        %v840 = vmul.f32 %v839, 1.442695
        %v841 = vpow.pop %v840
        %v842 = vsel %vm789, %v841, 0.0
        %843 = vadd.xlane.f32.xlu0 %v842
        %v844 = vpop.xlane.xlu0 %843
        %v845 = vrcp.pop %v844
        %v846 = vmul.f32 %v841, %v845
        %v847 = vpack.c.bf16 %v846, %v846
        %v849 = vsel %vm789, %v847, 0
        %vm851 = vcmask 1043456
        %v853 = vsel %vm851, %v788, 0
        %855 = vmatprep.subr.bf16.mxu0 0
        %856 = vmatpush1.bf16.msra.mxu0 0
        %857 = vmatprep.subr.bf16.mxu0 0
        %858 = vmatpush1.bf16.msra.mxu0 0
        %859 = vmatprep.subr.bf16.mxu0 0
        %860 = vmatpush1.bf16.msra.mxu0 0
        %861 = vmatprep.subr.bf16.mxu0 0
        %862 = vmatpush1.bf16.msra.mxu0 0
        %863 = vmatprep.subr.bf16.mxu0 0
        %864 = vmatpush1.bf16.msra.mxu0 0
        %865 = vmatprep.subr.bf16.mxu0 0
        %866 = vmatpush1.bf16.msra.mxu0 0
        %867 = vmatprep.subr.bf16.mxu0 0
        %868 = vmatpush1.bf16.msra.mxu0 0
        %869 = vmatprep.subr.bf16.mxu0 0
        %870 = vmatpush1.bf16.msra.mxu0 %v853
        %871 = vmatprep.subr.bf16.mxu0 0
        %872 = vmatpush2.bf16.msra.mxu0 0
        %873 = vmatprep.subr.bf16.mxu0 0
        %874 = vmatpush2.bf16.msra.mxu0 0
        %875 = vmatprep.subr.bf16.mxu0 0
        %876 = vmatpush2.bf16.msra.mxu0 0
        %877 = vmatprep.subr.bf16.mxu0 0
        %878 = vmatpush2.bf16.msra.mxu0 0
        %879 = vmatprep.subr.bf16.mxu0 0
        %880 = vmatpush2.bf16.msra.mxu0 0
        %881 = vmatprep.subr.bf16.mxu0 0
        %882 = vmatpush2.bf16.msra.mxu0 0
        %883 = vmatprep.subr.bf16.mxu0 0
        %884 = vmatpush2.bf16.msra.mxu0 0
        %885 = vmatprep.subr.bf16.mxu0 0
        %886 = vmatpush2.bf16.msra.mxu0 0
        %887 = vmatprep.mubr.bf16.mxu0 0
        %888 = vmatmul.mubr.bf16.gmra.mxu0 %v849
        %v889 = vpop.f32.mrf.mxu0
        %v890 = vadd.f32 0.0, %v889
        %v891 = vpop.f32.mrf.mxu0
        %v892 = vpop.f32.mrf.mxu0
        %v893 = vpop.f32.mrf.mxu0
        %894 = vdwg.mxu0
        %895 = vst.msk [vmem:[#allocation2] sm:$0xff] %vm789, %v890
        %897 = vrot.lane.b32.xlu0 %v786, 120
        %v898 = vpop.permute.xlu0 %897
        %900 = vrot.lane.b32.xlu0 %v787, 120
        %v901 = vpop.permute.xlu0 %900
        %v903 = vsel %vm789, %v898, 0
        %v906 = vsel %vm789, %v901, 0
        %908 = vmatprep.subr.bf16.mxu0 0
        %909 = vmatpush1.bf16.xpose.msra.mxu0 0
        %910 = vmatprep.subr.bf16.mxu0 0
        %911 = vmatpush1.bf16.xpose.msra.mxu0 0
        %912 = vmatprep.subr.bf16.mxu0 0
        %913 = vmatpush1.bf16.xpose.msra.mxu0 0
        %914 = vmatprep.subr.bf16.mxu0 0
        %915 = vmatpush1.bf16.xpose.msra.mxu0 0
        %916 = vmatprep.subr.bf16.mxu0 0
        %917 = vmatpush1.bf16.xpose.msra.mxu0 0
        %918 = vmatprep.subr.bf16.mxu0 0
        %919 = vmatpush1.bf16.xpose.msra.mxu0 0
        %920 = vmatprep.subr.bf16.mxu0 0
        %921 = vmatpush1.bf16.xpose.msra.mxu0 0
        %922 = vmatprep.subr.bf16.mxu0 0
        %923 = vmatpush1.bf16.xpose.msra.mxu0 %v906
        %924 = vmatprep.subr.bf16.mxu0 0
        %925 = vmatpush2.bf16.xpose.msra.mxu0 0
        %926 = vmatprep.subr.bf16.mxu0 0
        %927 = vmatpush2.bf16.xpose.msra.mxu0 0
        %928 = vmatprep.subr.bf16.mxu0 0
        %929 = vmatpush2.bf16.xpose.msra.mxu0 0
        %930 = vmatprep.subr.bf16.mxu0 0
        %931 = vmatpush2.bf16.xpose.msra.mxu0 0
        %932 = vmatprep.subr.bf16.mxu0 0
        %933 = vmatpush2.bf16.xpose.msra.mxu0 0
        %934 = vmatprep.subr.bf16.mxu0 0
        %935 = vmatpush2.bf16.xpose.msra.mxu0 0
        %936 = vmatprep.subr.bf16.mxu0 0
        %937 = vmatpush2.bf16.xpose.msra.mxu0 0
        %938 = vmatprep.subr.bf16.mxu0 0
        %939 = vmatpush2.bf16.xpose.msra.mxu0 0
        %940 = vmatprep.mubr.bf16.mxu0 0
        %941 = vmatmul.mubr.bf16.gmra.mxu0 %v903
        %v942 = vpop.f32.mrf.mxu0
        %v943 = vadd.f32 0.0, %v942
        %v944 = vpop.f32.mrf.mxu0
        %v945 = vpop.f32.mrf.mxu0
        %v946 = vpop.f32.mrf.mxu0
        %947 = vdwg.mxu0
        %v948 = vsel %vm789, %v943, -inf
        %949 = vmax.xlane.f32.xlu0 %v948
        %v950 = vpop.xlane.xlu0 %949
        %v951 = vsub.f32 %v943, %v950
        %v952 = vmul.f32 %v951, 1.442695
        %v953 = vpow.pop %v952
        %v954 = vsel %vm789, %v953, 0.0
        %955 = vadd.xlane.f32.xlu0 %v954
        %v956 = vpop.xlane.xlu0 %955
        %v957 = vrcp.pop %v956
        %v958 = vmul.f32 %v953, %v957
        %v959 = vpack.c.bf16 %v958, %v958
        %961 = vrot.lane.b32.xlu0 %v788, 120
        %v962 = vpop.permute.xlu0 %961
        %v964 = vsel %vm789, %v959, 0
        %v967 = vsel %vm851, %v962, 0
        %969 = vmatprep.subr.bf16.mxu0 0
        %970 = vmatpush1.bf16.msra.mxu0 0
        %971 = vmatprep.subr.bf16.mxu0 0
        %972 = vmatpush1.bf16.msra.mxu0 0
        %973 = vmatprep.subr.bf16.mxu0 0
        %974 = vmatpush1.bf16.msra.mxu0 0
        %975 = vmatprep.subr.bf16.mxu0 0
        %976 = vmatpush1.bf16.msra.mxu0 0
        %977 = vmatprep.subr.bf16.mxu0 0
        %978 = vmatpush1.bf16.msra.mxu0 0
        %979 = vmatprep.subr.bf16.mxu0 0
        %980 = vmatpush1.bf16.msra.mxu0 0
        %981 = vmatprep.subr.bf16.mxu0 0
        %982 = vmatpush1.bf16.msra.mxu0 0
        %983 = vmatprep.subr.bf16.mxu0 0
        %984 = vmatpush1.bf16.msra.mxu0 %v967
        %985 = vmatprep.subr.bf16.mxu0 0
        %986 = vmatpush2.bf16.msra.mxu0 0
        %987 = vmatprep.subr.bf16.mxu0 0
        %988 = vmatpush2.bf16.msra.mxu0 0
        %989 = vmatprep.subr.bf16.mxu0 0
        %990 = vmatpush2.bf16.msra.mxu0 0
        %991 = vmatprep.subr.bf16.mxu0 0
        %992 = vmatpush2.bf16.msra.mxu0 0
        %993 = vmatprep.subr.bf16.mxu0 0
        %994 = vmatpush2.bf16.msra.mxu0 0
        %995 = vmatprep.subr.bf16.mxu0 0
        %996 = vmatpush2.bf16.msra.mxu0 0
        %997 = vmatprep.subr.bf16.mxu0 0
        %998 = vmatpush2.bf16.msra.mxu0 0
        %999 = vmatprep.subr.bf16.mxu0 0
        %1000 = vmatpush2.bf16.msra.mxu0 0
        %1001 = vmatprep.mubr.bf16.mxu0 0
        %1002 = vmatmul.mubr.bf16.gmra.mxu0 %v964
        %v1003 = vpop.f32.mrf.mxu0
        %v1004 = vadd.f32 0.0, %v1003
        %v1005 = vpop.f32.mrf.mxu0
        %v1006 = vpop.f32.mrf.mxu0
        %v1007 = vpop.f32.mrf.mxu0
        %1008 = vdwg.mxu0
        %1010 = vrot.lane.b32.xlu0 %v1004, 8
        %v1011 = vpop.permute.xlu0 %1010
        %vm1013 = vcmask 130112
        %1014 = vst.msk [vmem:[#allocation2] sm:$0xff] %vm1013, %v1011
        %1015 = vrot.lane.b32.xlu0 %v786, 112
        %v1016 = vpop.permute.xlu0 %1015
        %1017 = vrot.lane.b32.xlu0 %v787, 112
        %v1018 = vpop.permute.xlu0 %1017
        %v1020 = vsel %vm789, %v1016, 0
        %v1023 = vsel %vm789, %v1018, 0
        %1025 = vmatprep.subr.bf16.mxu0 0
        %1026 = vmatpush1.bf16.xpose.msra.mxu0 0
        %1027 = vmatprep.subr.bf16.mxu0 0
        %1028 = vmatpush1.bf16.xpose.msra.mxu0 0
        %1029 = vmatprep.subr.bf16.mxu0 0
        %1030 = vmatpush1.bf16.xpose.msra.mxu0 0
        %1031 = vmatprep.subr.bf16.mxu0 0
        %1032 = vmatpush1.bf16.xpose.msra.mxu0 0
        %1033 = vmatprep.subr.bf16.mxu0 0
        %1034 = vmatpush1.bf16.xpose.msra.mxu0 0
        %1035 = vmatprep.subr.bf16.mxu0 0
        %1036 = vmatpush1.bf16.xpose.msra.mxu0 0
        %1037 = vmatprep.subr.bf16.mxu0 0
        %1038 = vmatpush1.bf16.xpose.msra.mxu0 0
        %1039 = vmatprep.subr.bf16.mxu0 0
        %1040 = vmatpush1.bf16.xpose.msra.mxu0 %v1023
        %1041 = vmatprep.subr.bf16.mxu0 0
        %1042 = vmatpush2.bf16.xpose.msra.mxu0 0
        %1043 = vmatprep.subr.bf16.mxu0 0
        %1044 = vmatpush2.bf16.xpose.msra.mxu0 0
        %1045 = vmatprep.subr.bf16.mxu0 0
        %1046 = vmatpush2.bf16.xpose.msra.mxu0 0
        %1047 = vmatprep.subr.bf16.mxu0 0
        %1048 = vmatpush2.bf16.xpose.msra.mxu0 0
        %1049 = vmatprep.subr.bf16.mxu0 0
        %1050 = vmatpush2.bf16.xpose.msra.mxu0 0
        %1051 = vmatprep.subr.bf16.mxu0 0
        %1052 = vmatpush2.bf16.xpose.msra.mxu0 0
        %1053 = vmatprep.subr.bf16.mxu0 0
        %1054 = vmatpush2.bf16.xpose.msra.mxu0 0
        %1055 = vmatprep.subr.bf16.mxu0 0
        %1056 = vmatpush2.bf16.xpose.msra.mxu0 0
        %1057 = vmatprep.mubr.bf16.mxu0 0
        %1058 = vmatmul.mubr.bf16.gmra.mxu0 %v1020
        %v1059 = vpop.f32.mrf.mxu0
        %v1060 = vadd.f32 0.0, %v1059
        %v1061 = vpop.f32.mrf.mxu0
        %v1062 = vpop.f32.mrf.mxu0
        %v1063 = vpop.f32.mrf.mxu0
        %1064 = vdwg.mxu0
        %v1065 = vsel %vm789, %v1060, -inf
        %1066 = vmax.xlane.f32.xlu0 %v1065
        %v1067 = vpop.xlane.xlu0 %1066
        %v1068 = vsub.f32 %v1060, %v1067
        %v1069 = vmul.f32 %v1068, 1.442695
        %v1070 = vpow.pop %v1069
        %v1071 = vsel %vm789, %v1070, 0.0
        %1072 = vadd.xlane.f32.xlu0 %v1071
        %v1073 = vpop.xlane.xlu0 %1072
        %v1074 = vrcp.pop %v1073
        %v1075 = vmul.f32 %v1070, %v1074
        %v1076 = vpack.c.bf16 %v1075, %v1075
        %1077 = vrot.lane.b32.xlu0 %v788, 112
        %v1078 = vpop.permute.xlu0 %1077
        %v1080 = vsel %vm789, %v1076, 0
        %v1083 = vsel %vm851, %v1078, 0
        %1085 = vmatprep.subr.bf16.mxu0 0
        %1086 = vmatpush1.bf16.msra.mxu0 0
        %1087 = vmatprep.subr.bf16.mxu0 0
        %1088 = vmatpush1.bf16.msra.mxu0 0
        %1089 = vmatprep.subr.bf16.mxu0 0
        %1090 = vmatpush1.bf16.msra.mxu0 0
        %1091 = vmatprep.subr.bf16.mxu0 0
        %1092 = vmatpush1.bf16.msra.mxu0 0
        %1093 = vmatprep.subr.bf16.mxu0 0
        %1094 = vmatpush1.bf16.msra.mxu0 0
        %1095 = vmatprep.subr.bf16.mxu0 0
        %1096 = vmatpush1.bf16.msra.mxu0 0
        %1097 = vmatprep.subr.bf16.mxu0 0
        %1098 = vmatpush1.bf16.msra.mxu0 0
        %1099 = vmatprep.subr.bf16.mxu0 0
        %1100 = vmatpush1.bf16.msra.mxu0 %v1083
        %1101 = vmatprep.subr.bf16.mxu0 0
        %1102 = vmatpush2.bf16.msra.mxu0 0
        %1103 = vmatprep.subr.bf16.mxu0 0
        %1104 = vmatpush2.bf16.msra.mxu0 0
        %1105 = vmatprep.subr.bf16.mxu0 0
        %1106 = vmatpush2.bf16.msra.mxu0 0
        %1107 = vmatprep.subr.bf16.mxu0 0
        %1108 = vmatpush2.bf16.msra.mxu0 0
        %1109 = vmatprep.subr.bf16.mxu0 0
        %1110 = vmatpush2.bf16.msra.mxu0 0
        %1111 = vmatprep.subr.bf16.mxu0 0
        %1112 = vmatpush2.bf16.msra.mxu0 0
        %1113 = vmatprep.subr.bf16.mxu0 0
        %1114 = vmatpush2.bf16.msra.mxu0 0
        %1115 = vmatprep.subr.bf16.mxu0 0
        %1116 = vmatpush2.bf16.msra.mxu0 0
        %1117 = vmatprep.mubr.bf16.mxu0 0
        %1118 = vmatmul.mubr.bf16.gmra.mxu0 %v1080
        %v1119 = vpop.f32.mrf.mxu0
        %v1120 = vadd.f32 0.0, %v1119
        %v1121 = vpop.f32.mrf.mxu0
        %v1122 = vpop.f32.mrf.mxu0
        %v1123 = vpop.f32.mrf.mxu0
        %1124 = vdwg.mxu0
        %1126 = vrot.lane.b32.xlu0 %v1120, 16
        %v1127 = vpop.permute.xlu0 %1126
        %vm1129 = vcmask 195712
        %1130 = vst.msk [vmem:[#allocation2] sm:$0xff] %vm1129, %v1127
        %1131 = vrot.lane.b32.xlu0 %v786, 104
        %v1132 = vpop.permute.xlu0 %1131
        %1133 = vrot.lane.b32.xlu0 %v787, 104
        %v1134 = vpop.permute.xlu0 %1133
        %v1136 = vsel %vm789, %v1132, 0
        %v1139 = vsel %vm789, %v1134, 0
        %1141 = vmatprep.subr.bf16.mxu0 0
        %1142 = vmatpush1.bf16.xpose.msra.mxu0 0
        %1143 = vmatprep.subr.bf16.mxu0 0
        %1144 = vmatpush1.bf16.xpose.msra.mxu0 0
        %1145 = vmatprep.subr.bf16.mxu0 0
        %1146 = vmatpush1.bf16.xpose.msra.mxu0 0
        %1147 = vmatprep.subr.bf16.mxu0 0
        %1148 = vmatpush1.bf16.xpose.msra.mxu0 0
        %1149 = vmatprep.subr.bf16.mxu0 0
        %1150 = vmatpush1.bf16.xpose.msra.mxu0 0
        %1151 = vmatprep.subr.bf16.mxu0 0
        %1152 = vmatpush1.bf16.xpose.msra.mxu0 0
        %1153 = vmatprep.subr.bf16.mxu0 0
        %1154 = vmatpush1.bf16.xpose.msra.mxu0 0
        %1155 = vmatprep.subr.bf16.mxu0 0
        %1156 = vmatpush1.bf16.xpose.msra.mxu0 %v1139
        %1157 = vmatprep.subr.bf16.mxu0 0
        %1158 = vmatpush2.bf16.xpose.msra.mxu0 0
        %1159 = vmatprep.subr.bf16.mxu0 0
        %1160 = vmatpush2.bf16.xpose.msra.mxu0 0
        %1161 = vmatprep.subr.bf16.mxu0 0
        %1162 = vmatpush2.bf16.xpose.msra.mxu0 0
        %1163 = vmatprep.subr.bf16.mxu0 0
        %1164 = vmatpush2.bf16.xpose.msra.mxu0 0
        %1165 = vmatprep.subr.bf16.mxu0 0
        %1166 = vmatpush2.bf16.xpose.msra.mxu0 0
        %1167 = vmatprep.subr.bf16.mxu0 0
        %1168 = vmatpush2.bf16.xpose.msra.mxu0 0
        %1169 = vmatprep.subr.bf16.mxu0 0
        %1170 = vmatpush2.bf16.xpose.msra.mxu0 0
        %1171 = vmatprep.subr.bf16.mxu0 0
        %1172 = vmatpush2.bf16.xpose.msra.mxu0 0
        %1173 = vmatprep.mubr.bf16.mxu0 0
        %1174 = vmatmul.mubr.bf16.gmra.mxu0 %v1136
        %v1175 = vpop.f32.mrf.mxu0
        %v1176 = vadd.f32 0.0, %v1175
        %v1177 = vpop.f32.mrf.mxu0
        %v1178 = vpop.f32.mrf.mxu0
        %v1179 = vpop.f32.mrf.mxu0
        %1180 = vdwg.mxu0
        %v1181 = vsel %vm789, %v1176, -inf
        %1182 = vmax.xlane.f32.xlu0 %v1181
        %v1183 = vpop.xlane.xlu0 %1182
        %v1184 = vsub.f32 %v1176, %v1183
        %v1185 = vmul.f32 %v1184, 1.442695
        %v1186 = vpow.pop %v1185
        %v1187 = vsel %vm789, %v1186, 0.0
        %1188 = vadd.xlane.f32.xlu0 %v1187
        %v1189 = vpop.xlane.xlu0 %1188
        %v1190 = vrcp.pop %v1189
        %v1191 = vmul.f32 %v1186, %v1190
        %v1192 = vpack.c.bf16 %v1191, %v1191
        %1193 = vrot.lane.b32.xlu0 %v788, 104
        %v1194 = vpop.permute.xlu0 %1193
        %v1196 = vsel %vm789, %v1192, 0
        %v1199 = vsel %vm851, %v1194, 0
        %1201 = vmatprep.subr.bf16.mxu0 0
        %1202 = vmatpush1.bf16.msra.mxu0 0
        %1203 = vmatprep.subr.bf16.mxu0 0
        %1204 = vmatpush1.bf16.msra.mxu0 0
        %1205 = vmatprep.subr.bf16.mxu0 0
        %1206 = vmatpush1.bf16.msra.mxu0 0
        %1207 = vmatprep.subr.bf16.mxu0 0
        %1208 = vmatpush1.bf16.msra.mxu0 0
        %1209 = vmatprep.subr.bf16.mxu0 0
        %1210 = vmatpush1.bf16.msra.mxu0 0
        %1211 = vmatprep.subr.bf16.mxu0 0
        %1212 = vmatpush1.bf16.msra.mxu0 0
        %1213 = vmatprep.subr.bf16.mxu0 0
        %1214 = vmatpush1.bf16.msra.mxu0 0
        %1215 = vmatprep.subr.bf16.mxu0 0
        %1216 = vmatpush1.bf16.msra.mxu0 %v1199
        %1217 = vmatprep.subr.bf16.mxu0 0
        %1218 = vmatpush2.bf16.msra.mxu0 0
        %1219 = vmatprep.subr.bf16.mxu0 0
        %1220 = vmatpush2.bf16.msra.mxu0 0
        %1221 = vmatprep.subr.bf16.mxu0 0
        %1222 = vmatpush2.bf16.msra.mxu0 0
        %1223 = vmatprep.subr.bf16.mxu0 0
        %1224 = vmatpush2.bf16.msra.mxu0 0
        %1225 = vmatprep.subr.bf16.mxu0 0
        %1226 = vmatpush2.bf16.msra.mxu0 0
        %1227 = vmatprep.subr.bf16.mxu0 0
        %1228 = vmatpush2.bf16.msra.mxu0 0
        %1229 = vmatprep.subr.bf16.mxu0 0
        %1230 = vmatpush2.bf16.msra.mxu0 0
        %1231 = vmatprep.subr.bf16.mxu0 0
        %1232 = vmatpush2.bf16.msra.mxu0 0
        %1233 = vmatprep.mubr.bf16.mxu0 0
        %1234 = vmatmul.mubr.bf16.gmra.mxu0 %v1196
        %v1235 = vpop.f32.mrf.mxu0
        %v1236 = vadd.f32 0.0, %v1235
        %v1237 = vpop.f32.mrf.mxu0
        %v1238 = vpop.f32.mrf.mxu0
        %v1239 = vpop.f32.mrf.mxu0
        %1240 = vdwg.mxu0
        %1242 = vrot.lane.b32.xlu0 %v1236, 24
        %v1243 = vpop.permute.xlu0 %1242
        %vm1245 = vcmask 261312
        %1246 = vst.msk [vmem:[#allocation2] sm:$0xff] %vm1245, %v1243
        %v1247 = vld [vmem:[#allocation2] sm:$0xff]
        %v1248 = vpack.c.bf16 %v1247, %v1247
        %v1249 = vld [vmem:[%s9] sm:$0xf]
        %v1250 = vld [vmem:[%s9 + $0x4] sm:$0xf]
        %v1251 = vld [vmem:[%s9 + $0x8] sm:$0xf]
        %v1252 = vld [vmem:[%s9 + $0xc] sm:$0xf]
        %v1253 = vld [vmem:[%s10] sm:$0x1]
        %v1255 = vlaneseq
        %v1256 = vshrl.u32 %v1255, 7
        %v1257 = vsub.s32 0, %v1256
        %v1258 = vrot.slane %v1253, %v1257
        %v1264 = vunpack.c.l.b16 %v1249
        %v1265 = vunpack.c.l.b16 %v1250
        %v1266 = vunpack.c.l.b16 %v1251
        %v1267 = vunpack.c.l.b16 %v1252
        %v1268 = vpack.c.b16 %v1265, %v1264
        %v1269 = vpack.c.b16 %v1267, %v1266
        %v1273 = vsel %vm563, %v1248, 0
        %1275 = vmatprep.subr.bf16.mxu0 0
        %1276 = vmatpush1.bf16.msra.mxu0 0
        %1277 = vmatprep.subr.bf16.mxu0 0
        %1278 = vmatpush1.bf16.msra.mxu0 0
        %1279 = vmatprep.subr.bf16.mxu0 0
        %1280 = vmatpush1.bf16.msra.mxu0 0
        %1281 = vmatprep.subr.bf16.mxu0 0
        %1282 = vmatpush1.bf16.msra.mxu0 0
        %1283 = vmatprep.subr.bf16.mxu0 0
        %1284 = vmatpush1.bf16.msra.mxu0 0
        %1285 = vmatprep.subr.bf16.mxu0 0
        %1286 = vmatpush1.bf16.msra.mxu0 0
        %1287 = vmatprep.subr.bf16.mxu0 0
        %1288 = vmatpush1.bf16.msra.mxu0 %v1269
        %1289 = vmatprep.subr.bf16.mxu0 0
        %1290 = vmatpush1.bf16.msra.mxu0 %v1268
        %1291 = vmatprep.subr.bf16.mxu0 0
        %1292 = vmatpush2.bf16.msra.mxu0 0
        %1293 = vmatprep.subr.bf16.mxu0 0
        %1294 = vmatpush2.bf16.msra.mxu0 0
        %1295 = vmatprep.subr.bf16.mxu0 0
        %1296 = vmatpush2.bf16.msra.mxu0 0
        %1297 = vmatprep.subr.bf16.mxu0 0
        %1298 = vmatpush2.bf16.msra.mxu0 0
        %1299 = vmatprep.subr.bf16.mxu0 0
        %1300 = vmatpush2.bf16.msra.mxu0 0
        %1301 = vmatprep.subr.bf16.mxu0 0
        %1302 = vmatpush2.bf16.msra.mxu0 0
        %1303 = vmatprep.subr.bf16.mxu0 0
        %1304 = vmatpush2.bf16.msra.mxu0 0
        %1305 = vmatprep.subr.bf16.mxu0 0
        %1306 = vmatpush2.bf16.msra.mxu0 0
        %1307 = vmatprep.mubr.bf16.mxu0 0
        %1308 = vmatmul.mubr.bf16.gmra.mxu0 %v1273
        %v1309 = vpop.f32.mrf.mxu0
        %v1310 = vadd.f32 %v1258, %v1309
        %v1311 = vpop.f32.mrf.mxu0
        %v1312 = vpop.f32.mrf.mxu0
        %v1313 = vpop.f32.mrf.mxu0
        %1314 = vdwg.mxu0
        %v1315 = vadd.f32 %v560, %v1310
        %v1316 = vld [vmem:[%s11] sm:$0x1]
        %v1317 = vld [vmem:[%s12] sm:$0x1]
        %v1318 = vsel %vm563, %v1315, 0.0
        %1319 = vadd.xlane.f32.xlu0 %v1318
        %v1320 = vpop.xlane.xlu0 %1319
        %v1321 = vmul.f32 %v1320, %v567
        %v1322 = vsub.f32 %v1315, %v1321
        %v1323 = vmul.f32 %v1322, %v1322
        %v1324 = vsel %vm563, %v1323, 0.0
        %1325 = vadd.xlane.f32.xlu0 %v1324
        %v1326 = vpop.xlane.xlu0 %1325
        %v1327 = vmul.f32 %v1326, %v567
        %v1328 = vadd.f32 %v1327, 1e-05
        %v1329 = vrsqrt.pop %v1328
        %v1330 = vmul.f32 %v1322, %v1329
        %v1332 = vlaneseq
        %v1333 = vshrl.u32 %v1332, 7
        %v1334 = vsub.s32 0, %v1333
        %v1335 = vrot.slane %v1316, %v1334
        %v1337 = vmul.f32 %v1330, %v1335
        %v1339 = vlaneseq
        %v1340 = vshrl.u32 %v1339, 7
        %v1341 = vsub.s32 0, %v1340
        %v1342 = vrot.slane %v1317, %v1341
        %v1344 = vadd.f32 %v1337, %v1342
        %v1345 = vpack.c.bf16 %v1344, %v1344
        %v1346 = vld [vmem:[#allocation3] sm:$0xf]
        %v1347 = vld [vmem:[#allocation3 + $0x4] sm:$0xf]
        %v1348 = vld [vmem:[#allocation3 + $0x8] sm:$0xf]
        %v1349 = vld [vmem:[#allocation3 + $0xc] sm:$0xf]
        %v1350 = vld [vmem:[%s14] sm:$0x1]
        %v1352 = vlaneseq
        %v1353 = vshrl.u32 %v1352, 7
        %v1354 = vsub.s32 0, %v1353
        %v1355 = vrot.slane %v1350, %v1354
        %v1361 = vunpack.c.l.b16 %v1346
        %v1362 = vunpack.c.l.b16 %v1347
        %v1363 = vunpack.c.l.b16 %v1348
        %v1364 = vunpack.c.l.b16 %v1349
        %v1365 = vpack.c.b16 %v1362, %v1361
        %v1366 = vpack.c.b16 %v1364, %v1363
        %v1370 = vsel %vm563, %v1345, 0
        %1372 = vmatprep.subr.bf16.mxu0 0
        %1373 = vmatpush1.bf16.msra.mxu0 0
        %1374 = vmatprep.subr.bf16.mxu0 0
        %1375 = vmatpush1.bf16.msra.mxu0 0
        %1376 = vmatprep.subr.bf16.mxu0 0
        %1377 = vmatpush1.bf16.msra.mxu0 0
        %1378 = vmatprep.subr.bf16.mxu0 0
        %1379 = vmatpush1.bf16.msra.mxu0 0
        %1380 = vmatprep.subr.bf16.mxu0 0
        %1381 = vmatpush1.bf16.msra.mxu0 0
        %1382 = vmatprep.subr.bf16.mxu0 0
        %1383 = vmatpush1.bf16.msra.mxu0 0
        %1384 = vmatprep.subr.bf16.mxu0 0
        %1385 = vmatpush1.bf16.msra.mxu0 %v1366
        %1386 = vmatprep.subr.bf16.mxu0 0
        %1387 = vmatpush1.bf16.msra.mxu0 %v1365
        %1388 = vmatprep.subr.bf16.mxu0 0
        %1389 = vmatpush2.bf16.msra.mxu0 0
        %1390 = vmatprep.subr.bf16.mxu0 0
        %1391 = vmatpush2.bf16.msra.mxu0 0
        %1392 = vmatprep.subr.bf16.mxu0 0
        %1393 = vmatpush2.bf16.msra.mxu0 0
        %1394 = vmatprep.subr.bf16.mxu0 0
        %1395 = vmatpush2.bf16.msra.mxu0 0
        %1396 = vmatprep.subr.bf16.mxu0 0
        %1397 = vmatpush2.bf16.msra.mxu0 0
        %1398 = vmatprep.subr.bf16.mxu0 0
        %1399 = vmatpush2.bf16.msra.mxu0 0
        %1400 = vmatprep.subr.bf16.mxu0 0
        %1401 = vmatpush2.bf16.msra.mxu0 0
        %1402 = vmatprep.subr.bf16.mxu0 0
        %1403 = vmatpush2.bf16.msra.mxu0 0
        %1404 = vmatprep.mubr.bf16.mxu0 0
        %1405 = vmatmul.mubr.bf16.gmra.mxu0 %v1370
        %v1406 = vpop.f32.mrf.mxu0
        %v1407 = vadd.f32 %v1355, %v1406
        %v1408 = vpop.f32.mrf.mxu0
        %v1409 = vpop.f32.mrf.mxu0
        %v1410 = vpop.f32.mrf.mxu0
        %1411 = vdwg.mxu0
        %v1412 = vmul.f32 %v1407, 0.5
        %v1413 = vmul.f32 %v1407, 0.70710677
        %v1414 = verf.f32.pop %v1413
        %v1415 = vadd.f32 %v1414, 1.0
        %v1416 = vmul.f32 %v1412, %v1415
        %v1417 = vpack.c.bf16 %v1416, %v1416
        %v1418 = vld [vmem:[%s15] sm:$0xf]
        %v1419 = vld [vmem:[%s15 + $0x4] sm:$0xf]
        %v1420 = vld [vmem:[%s15 + $0x8] sm:$0xf]
        %v1421 = vld [vmem:[%s15 + $0xc] sm:$0xf]
        %v1422 = vld [vmem:[%s15 + $0x10] sm:$0xf]
        %v1423 = vld [vmem:[%s15 + $0x14] sm:$0xf]
        %v1424 = vld [vmem:[%s15 + $0x18] sm:$0xf]
        %v1425 = vld [vmem:[%s15 + $0x1c] sm:$0xf]
        %v1426 = vld [vmem:[%s15 + $0x20] sm:$0xf]
        %v1427 = vld [vmem:[%s15 + $0x24] sm:$0xf]
        %v1428 = vld [vmem:[%s15 + $0x28] sm:$0xf]
        %v1429 = vld [vmem:[%s15 + $0x2c] sm:$0xf]
        %v1430 = vld [vmem:[%s15 + $0x30] sm:$0xf]
        %v1431 = vld [vmem:[%s15 + $0x34] sm:$0xf]
        %v1432 = vld [vmem:[%s15 + $0x38] sm:$0xf]
        %v1433 = vld [vmem:[%s15 + $0x3c] sm:$0xf]
        %v1434 = vld [vmem:[%s16] sm:$0x1]
        %v1436 = vlaneseq
        %v1437 = vshrl.u32 %v1436, 7
        %v1438 = vsub.s32 0, %v1437
        %v1439 = vrot.slane %v1434, %v1438
        %v1457 = vunpack.c.l.b16 %v1418
        %v1458 = vunpack.c.l.b16 %v1419
        %v1459 = vunpack.c.l.b16 %v1420
        %v1460 = vunpack.c.l.b16 %v1421
        %v1461 = vunpack.c.l.b16 %v1422
        %v1462 = vunpack.c.l.b16 %v1423
        %v1463 = vunpack.c.l.b16 %v1424
        %v1464 = vunpack.c.l.b16 %v1425
        %v1465 = vunpack.c.l.b16 %v1426
        %v1466 = vunpack.c.l.b16 %v1427
        %v1467 = vunpack.c.l.b16 %v1428
        %v1468 = vunpack.c.l.b16 %v1429
        %v1469 = vunpack.c.l.b16 %v1430
        %v1470 = vunpack.c.l.b16 %v1431
        %v1471 = vunpack.c.l.b16 %v1432
        %v1472 = vunpack.c.l.b16 %v1433
        %v1473 = vpack.c.b16 %v1458, %v1457
        %v1474 = vpack.c.b16 %v1460, %v1459
        %v1475 = vpack.c.b16 %v1462, %v1461
        %v1476 = vpack.c.b16 %v1464, %v1463
        %v1477 = vpack.c.b16 %v1466, %v1465
        %v1478 = vpack.c.b16 %v1468, %v1467
        %v1479 = vpack.c.b16 %v1470, %v1469
        %v1480 = vpack.c.b16 %v1472, %v1471
        %1489 = vmatprep.subr.bf16.mxu0 0
        %1490 = vmatpush1.bf16.msra.mxu0 %v1480
        %1491 = vmatprep.subr.bf16.mxu0 0
        %1492 = vmatpush1.bf16.msra.mxu0 %v1479
        %1493 = vmatprep.subr.bf16.mxu0 0
        %1494 = vmatpush1.bf16.msra.mxu0 %v1478
        %1495 = vmatprep.subr.bf16.mxu0 0
        %1496 = vmatpush1.bf16.msra.mxu0 %v1477
        %1497 = vmatprep.subr.bf16.mxu0 0
        %1498 = vmatpush1.bf16.msra.mxu0 %v1476
        %1499 = vmatprep.subr.bf16.mxu0 0
        %1500 = vmatpush1.bf16.msra.mxu0 %v1475
        %1501 = vmatprep.subr.bf16.mxu0 0
        %1502 = vmatpush1.bf16.msra.mxu0 %v1474
        %1503 = vmatprep.subr.bf16.mxu0 0
        %1504 = vmatpush1.bf16.msra.mxu0 %v1473
        %1505 = vmatprep.subr.bf16.mxu0 0
        %1506 = vmatpush2.bf16.msra.mxu0 0
        %1507 = vmatprep.subr.bf16.mxu0 0
        %1508 = vmatpush2.bf16.msra.mxu0 0
        %1509 = vmatprep.subr.bf16.mxu0 0
        %1510 = vmatpush2.bf16.msra.mxu0 0
        %1511 = vmatprep.subr.bf16.mxu0 0
        %1512 = vmatpush2.bf16.msra.mxu0 0
        %1513 = vmatprep.subr.bf16.mxu0 0
        %1514 = vmatpush2.bf16.msra.mxu0 0
        %1515 = vmatprep.subr.bf16.mxu0 0
        %1516 = vmatpush2.bf16.msra.mxu0 0
        %1517 = vmatprep.subr.bf16.mxu0 0
        %1518 = vmatpush2.bf16.msra.mxu0 0
        %1519 = vmatprep.subr.bf16.mxu0 0
        %1520 = vmatpush2.bf16.msra.mxu0 0
        %1521 = vmatprep.mubr.bf16.mxu0 0
        %1522 = vmatmul.mubr.bf16.gmra.mxu0 %v1417
        %v1523 = vpop.f32.mrf.mxu0
        %v1524 = vadd.f32 %v1439, %v1523
        %v1525 = vpop.f32.mrf.mxu0
        %v1526 = vpop.f32.mrf.mxu0
        %v1527 = vpop.f32.mrf.mxu0
        %1528 = vdwg.mxu0
        %v1529 = vadd.f32 %v1315, %v1524
        %1530 = vst.msk [vmem:[%s554] sm:$0xff] %vm563, %v1529
        %s1531 = sand.u32 %s402, 1
        %s1532 = scalar_lea.sflag [#allocation5], %s1531
        %s1533 = sand.u32 %s402, 1
        %s1534 = smul.addr %s1533, 8
        %s1535 = scalar_lea.vmem [#allocation6], %s1534
        // Predicated region
        $region93: #{tpu_custom_call.1} parent=87 // pred_check
          %p1536 = pneg %p412
        $region94: #{tpu_custom_call.1} parent=87 // pred_check_branch
          %1538 = sbr.rel (%p1536) target = $region96
        $region95: #{tpu_custom_call.1} parent=87 // pred_region
          %s1540 = ssub.s32 128, 128
          %1541 = vsyncadd %s1532, %s1540
          %s1542 = smul.addr %s32, 128
          %s1543 = scalar_lea.hbm %s17, %s1542
          %s1545 = sshll.u32 %s1535, 4
          %s1546 = int_to_ptr.vmem [resolvable:$true] %s1545
          %1548 = dma.vmem_to_hbm [thread:$0]  %s1546, 128, %s1543, %s1532
        $region96: #{tpu_custom_call.1} parent=87 // pred_fallthru
          _
      $region88: #{tpu_custom_call.1} parent=5 // pred_fallthru
        _
      %p1549 = scmp.le.s32.totalorder 2, %s27
      // Predicated region
      $region97: #{tpu_custom_call.1} parent=5 // pred_check
        %p1550 = pneg %p1549
      $region98: #{tpu_custom_call.1} parent=5 // pred_check_branch
        %1552 = sbr.rel (%p1550) target = $region100
      $region99: #{tpu_custom_call.1} parent=5 // pred_region
        %s1553 = ssub.s32 %s27, 2
        // Predicated region
        $region101: #{tpu_custom_call.1} parent=99 // pred_check
          %p1554 = pneg %p418
        $region102: #{tpu_custom_call.1} parent=99 // pred_check_branch
          %1556 = sbr.rel (%p1554) target = $region104
        $region103: #{tpu_custom_call.1} parent=99 // pred_region
          %s1557 = sand.u32 %s403, 1
          %s1558 = scalar_lea.sflag [#allocation5], %s1557
          %s1559 = sand.u32 %s403, 1
          %s1560 = smul.addr %s1559, 8
          %s1561 = scalar_lea.vmem [#allocation6], %s1560
          %1562 = dma.done %s1558, 128
        $region104: #{tpu_custom_call.1} parent=99 // pred_fallthru
          _
      $region100: #{tpu_custom_call.1} parent=5 // pred_fallthru
        _
    $region6: #{tpu_custom_call.1} parent=1 // loop_footer
      %s31 = sadd.s32 1, %s27
    $region7: #{tpu_custom_call.1} parent=1 // loop_footer_branch
      %26 = sbr.rel target = $region3
    $region8: #{tpu_custom_call.1} parent=1 // loop_exit
      _
    %1563 = vsyncpa [#allocation4], 1
    %s1564 = scalar_lea.sflag [#allocation4], 1
    %1565 = vsyncpa %s1564, 1
    %1566 = vsyncpa [#allocation5], 1
    %s1567 = scalar_lea.sflag [#allocation5], 1
    %1568 = vsyncpa %s1567, 1

</llo_original>
